<compile_context>
chip_gen: v7x
topology: tpu7x:2x2x1
jax: 0.10.0
libtpu: 0.0.40
codegen_flags: <defaults>
</compile_context>

<pallas_src>
import math
import numpy as np

import jax
import jax.numpy as jnp
from jax.experimental import pallas as pl
from jax.experimental.pallas import tpu as pltpu


# ----------------------------- host-side constant operators ----------------------------- #
def bilinear_upsample_matrix_ac(out_size, in_size):
    """1-D factor of F.interpolate(mode='bilinear', align_corners=True)."""
    U = np.zeros((out_size, in_size), np.float32)
    for o in range(out_size):
        src = 0.0 if out_size == 1 else o * (in_size - 1) / (out_size - 1)
        i0 = min(int(math.floor(src)), in_size - 1)
        i1 = min(i0 + 1, in_size - 1)
        lam = src - i0
        U[o, i0] += 1.0 - lam
        U[o, i1] += lam
    return U


def shifted_operators(U, out_size):
    """Stack of the 3 conv-shifted (zero-padded) copies of a 1-D upsample operator."""
    in_size = U.shape[1]
    Up = np.zeros((out_size + 2, in_size), np.float32)
    Up[1:out_size + 1] = U
    return np.stack([Up[d:d + out_size] for d in range(3)], axis=0)   # (3, out, in)


# --------------------------------------- Pallas kernel ----------------------------------- #
def make_point_matcher(N, C, H, W, Hl, Wl, images_per_step=1):
    """Returns forward(x_high_NCHW, x_low_NCHW, w_conv_(1,2C,3,3), b_conv_(1,)) -> (N,1,H,W)."""
    B = images_per_step
    assert N % B == 0, "batch must be divisible by images_per_step"
    Hp, Wp = H + 2, W + 2                 # zero-padded conv grid
    Mp = Hp * Wp
    Mext = Mp + 2                         # 1-element flat margin so all 9 slices stay in bounds
    L = H * Wp                            # flat output slab per image (rows 1..H of padded grid)
    CWl = C * Wl

    # Host constants (weight-independent): shifted 1-D bilinear operators.
    UhS = jnp.asarray(shifted_operators(bilinear_upsample_matrix_ac(H, Hl), H))   # (3, H, Hl)
    UwS_np = shifted_operators(bilinear_upsample_matrix_ac(W, Wl), W)             # (3, W, Wl)

    def kernel(xh_ref, xl_ref, whiT_ref, r_ref, uhs_ref, b_ref, o_ref):
        bias = b_ref[0, 0]                                            # scalar from SMEM
        for i in range(B):
            # ---------------- high branch: x_high part of the 3x3 conv ---------------- #
            xh = xh_ref[i].astype(jnp.float32)                        # (C, Mext), padded grid on lanes
            taps = jnp.dot(whiT_ref[...], xh,
                           preferred_element_type=jnp.float32)        # (9, Mext) tap maps
            # 3x3 conv (single output channel) = sum of 9 shifted, lane-dense slices.
            acc = taps[0:1, 0:L]
            for k in range(1, 9):
                dy, dx = divmod(k, 3)
                s = dy * Wp + dx
                acc = acc + taps[k:k + 1, s:s + L]                    # (1, L)
            acc = acc + bias

            # ---------------- low branch: conv(pad(bilinear_up(x_low))) --------------- #
            # Upsample / pad / dx-shift / low-channel weights are folded into R[dy];
            # Uh and the dy-shift into uhs[dy].  (For very large C one would instead
            # project to the 9 taps first; at PFNet sizes this keeps R small.)
            xl = xl_ref[i].astype(jnp.float32)                        # (Hl, C*Wl)
            zlo = None
            for dy in range(3):
                bdy = jnp.dot(xl, r_ref[dy],
                              preferred_element_type=jnp.float32)     # (Hl, Wp)
                t = jnp.dot(uhs_ref[dy], bdy,
                            preferred_element_type=jnp.float32)       # (H, Wp)
                zlo = t if zlo is None else zlo + t

            # ---------------- join, sigmoid, lane-dense flat store -------------------- #
            o_ref[i, 0:1, :] = acc
            for y in range(H):                                        # scatter rows into the flat slab
                c0, c1 = y * Wp, (y + 1) * Wp
                o_ref[i, 0:1, c0:c1] = o_ref[i, 0:1, c0:c1] + zlo[y:y + 1, :]
            v = o_ref[i, 0:1, :]
            o_ref[i, 0:1, :] = pl.reciprocal(1.0 + jnp.exp(-v), approx=True)   # sigmoid (EUP only)

    grid_spec = pltpu.PrefetchScalarGridSpec(
        num_scalar_prefetch=0,
        grid=(N // B,),
        in_specs=[
            pl.BlockSpec((B, C, Mext), lambda n: (n, 0, 0)),          # padded flat x_high
            pl.BlockSpec((B, Hl, CWl), lambda n: (n, 0, 0)),          # x_low, rows x (chan, col)
            pl.BlockSpec((9, C), lambda n: (0, 0)),                   # high-channel conv taps
            pl.BlockSpec((3, CWl, Wp), lambda n: (0, 0, 0)),          # folded Uw/dx/low-weight operator
            pl.BlockSpec((3, H, Hl), lambda n: (0, 0, 0)),            # folded Uh/dy operator
            pl.BlockSpec(memory_space=pltpu.MemorySpace.SMEM),        # conv bias (scalar)
        ],
        out_specs=pl.BlockSpec((B, 1, L), lambda n: (n, 0, 0)),
    )

    call = pl.pallas_call(
        kernel,
        out_shape=jax.ShapeDtypeStruct((N, 1, L), jnp.float32),
        grid_spec=grid_spec,
        compiler_params=pltpu.CompilerParams(dimension_semantics=("parallel",)),
    )

    def forward(x_high, x_low, w_conv, b_conv):
        f32 = jnp.float32
        # High-branch input: zero-pad spatially, flatten the padded grid onto the lane
        # axis (NCHW kept, no transpose), add a 1-element flat margin, cast to bf16.
        xh = jnp.pad(x_high.astype(f32), ((0, 0), (0, 0), (1, 1), (1, 1)))
        xh = xh.reshape(N, C, Mp)
        xh = jnp.pad(xh, ((0, 0), (0, 0), (1, 1))).astype(jnp.bfloat16)        # (N, C, Mext)

        # Low-branch input: (N, Hl, C*Wl); only the small low-res tensor is transposed.
        xl = jnp.transpose(x_low.astype(f32), (0, 2, 1, 3)).reshape(N, Hl, CWl)
        xl = xl.astype(jnp.bfloat16)

        wt = w_conv.reshape(2 * C, 3, 3).astype(f32)      # wt[c, dy, dx]
        whiT = wt[:C].reshape(C, 9).T                     # (9, C)  high channels (cat order: high, low)
        wlo = wt[C:]                                      # (C, 3, 3) low channels
        # R[dy, c*Wl+b, x'] = sum_dx wlo[c,dy,dx] * UwS[dx][x'-1, b], zero border columns.
        R = jnp.einsum('cyd,dxb->ycbx', wlo, jnp.asarray(UwS_np))              # (3, C, Wl, W)
        R = jnp.pad(R.reshape(3, CWl, W), ((0, 0), (0, 0), (1, 1)))            # (3, C*Wl, Wp)

        bias = b_conv.reshape(1, 1).astype(f32)

        out = call(xh, xl, whiT, R, UhS, bias)            # (N, 1, H*Wp), lane-dense slab
        out = out.reshape(N, 1, H, Wp)[:, :, :, 1:W + 1]  # drop the two pad columns
        return out                                        # (N, 1, H, W), NCHW like PyTorch

    return jax.jit(forward)


# --------------------------------- pure-JAX reference ------------------------------------ #
def reference_forward(x_high, x_low, w_conv, b_conv):
    """Direct translation of the PyTorch module (HIGHEST precision ground truth)."""
    N, C, H, W = x_high.shape
    Hl, Wl = x_low.shape[2], x_low.shape[3]
    Uh = jnp.asarray(bilinear_upsample_matrix_ac(H, Hl))
    Uw = jnp.asarray(bilinear_upsample_matrix_ac(W, Wl))
    up = jnp.einsum('hp,ncpq->nchq', Uh, x_low, precision=jax.lax.Precision.HIGHEST)
    up = jnp.einsum('wq,nchq->nchw', Uw, up, precision=jax.lax.Precision.HIGHEST)
    cat = jnp.concatenate([x_high, up], axis=1)                          # (N, 2C, H, W)
    z = jax.lax.conv_general_dilated(
        cat, w_conv, window_strides=(1, 1), padding=((1, 1), (1, 1)),
        dimension_numbers=('NCHW', 'OIHW', 'NCHW'),
        precision=jax.lax.Precision.HIGHEST)
    z = z + b_conv.reshape(1, 1, 1, 1)
    return jax.nn.sigmoid(z)                                             # (N, 1, H, W)


# -------------------------------------------- main --------------------------------------- #
if __name__ == "__main__":
    N, dim, H, W = 2, 4, 16, 16      # x_high: (2, 4, 16, 16)
    Hl, Wl = 8, 8                    # x_low:  (2, 4, 8, 8)

    key = jax.random.PRNGKey(0)
    k1, k2, k3, k4 = jax.random.split(key, 4)
    x_high = jax.random.normal(k1, (N, dim, H, W), jnp.float32)
    x_low = jax.random.normal(k2, (N, dim, Hl, Wl), jnp.float32)
    w_conv = 0.1 * jax.random.normal(k3, (1, 2 * dim, 3, 3), jnp.float32)
    b_conv = 0.1 * jax.random.normal(k4, (1,), jnp.float32)

    fwd = make_point_matcher(N, dim, H, W, Hl, Wl, images_per_step=1)
    out = jax.block_until_ready(fwd(x_high, x_low, w_conv, b_conv))
    assert out.shape == (N, 1, H, W), out.shape

    ref = jax.block_until_ready(reference_forward(x_high, x_low, w_conv, b_conv))
    err = float(jnp.max(jnp.abs(out - ref)))
    # Kernel uses bf16-cast activations, default-precision MXU passes and an approx
    # EUP reciprocal vs. a HIGHEST-precision f32 reference; 3e-3 comfortably covers
    # the combined error (expected max ~1e-3 post-sigmoid).
    assert err < 3e-3, f"max abs err vs reference = {err}"

    print("KERNEL_OK")
</pallas_src>

<mosaic_0001>
module attributes {stable_mosaic.version = 11 : i64} {
  func.func @kernel(%arg0: i32, %arg1: memref<1x4x326xbf16, #tpu.memory_space<vmem>>, %arg2: memref<1x8x32xbf16, #tpu.memory_space<vmem>>, %arg3: memref<9x4xf32, #tpu.memory_space<vmem>>, %arg4: memref<3x32x18xf32, #tpu.memory_space<vmem>>, %arg5: memref<3x16x8xf32, #tpu.memory_space<vmem>>, %arg6: memref<1x1xf32, #tpu.memory_space<smem>>, %arg7: memref<1x1x288xf32, #tpu.memory_space<vmem>>) attributes {dimension_semantics = [#tpu.dimension_semantics<parallel>], iteration_bounds = array<i64: 2>, scalar_prefetch = 0 : i64, scratch_operands = 0 : i64, tpu.core_type = #tpu.core_type<tc>, window_params = [{transform_indices = @transform_0, window_bounds = array<i64: 1, 4, 326>}, {transform_indices = @transform_1, window_bounds = array<i64: 1, 8, 32>}, {pipeline_mode = #tpu.pipeline_mode<synchronous>, transform_indices = @transform_2, window_bounds = array<i64: 9, 4>}, {pipeline_mode = #tpu.pipeline_mode<synchronous>, transform_indices = @transform_3, window_bounds = array<i64: 3, 32, 18>}, {pipeline_mode = #tpu.pipeline_mode<synchronous>, transform_indices = @transform_4, window_bounds = array<i64: 3, 16, 8>}, {transform_indices = @transform_5, window_bounds = array<i64: 1, 1>}, {transform_indices = @transform_6, window_bounds = array<i64: 1, 1, 288>}]} {
    %c0 = arith.constant 0 : index
    %c0_0 = arith.constant 0 : index
    %0 = memref.load %arg6[%c0, %c0_0] : memref<1x1xf32, #tpu.memory_space<smem>>
    %c0_1 = arith.constant 0 : index
    %c0_2 = arith.constant 0 : index
    %c0_3 = arith.constant 0 : index
    %1 = vector.load %arg1[%c0_1, %c0_2, %c0_3] : memref<1x4x326xbf16, #tpu.memory_space<vmem>>, vector<1x4x326xbf16>
    %2 = vector.shape_cast %1 : vector<1x4x326xbf16> to vector<4x326xbf16>
    %3 = arith.extf %2 : vector<4x326xbf16> to vector<4x326xf32>
    %c0_4 = arith.constant 0 : index
    %c0_5 = arith.constant 0 : index
    %4 = vector.load %arg3[%c0_4, %c0_5] : memref<9x4xf32, #tpu.memory_space<vmem>>, vector<9x4xf32>
    %cst = arith.constant dense<0.000000e+00> : vector<9x326xf32>
    %5 = tpu.matmul %4, %3, %cst {dimension_numbers = #tpu.dot_dimension_numbers<[1], [0], [0], [1], [0, 0, 1, 1], [], []>} : vector<9x4xf32>, vector<4x326xf32>, vector<9x326xf32> -> vector<9x326xf32>
    %6 = vector.extract_strided_slice %5 {offsets = [0, 0], sizes = [1, 288], strides = [1, 1]} : vector<9x326xf32> to vector<1x288xf32>
    %7 = vector.extract_strided_slice %5 {offsets = [1, 1], sizes = [1, 288], strides = [1, 1]} : vector<9x326xf32> to vector<1x288xf32>
    %8 = arith.addf %6, %7 : vector<1x288xf32>
    %9 = vector.extract_strided_slice %5 {offsets = [2, 2], sizes = [1, 288], strides = [1, 1]} : vector<9x326xf32> to vector<1x288xf32>
    %10 = arith.addf %8, %9 : vector<1x288xf32>
    %11 = vector.extract_strided_slice %5 {offsets = [3, 18], sizes = [1, 288], strides = [1, 1]} : vector<9x326xf32> to vector<1x288xf32>
    %12 = arith.addf %10, %11 : vector<1x288xf32>
    %13 = vector.extract_strided_slice %5 {offsets = [4, 19], sizes = [1, 288], strides = [1, 1]} : vector<9x326xf32> to vector<1x288xf32>
    %14 = arith.addf %12, %13 : vector<1x288xf32>
    %15 = vector.extract_strided_slice %5 {offsets = [5, 20], sizes = [1, 288], strides = [1, 1]} : vector<9x326xf32> to vector<1x288xf32>
    %16 = arith.addf %14, %15 : vector<1x288xf32>
    %17 = vector.extract_strided_slice %5 {offsets = [6, 36], sizes = [1, 288], strides = [1, 1]} : vector<9x326xf32> to vector<1x288xf32>
    %18 = arith.addf %16, %17 : vector<1x288xf32>
    %19 = vector.extract_strided_slice %5 {offsets = [7, 37], sizes = [1, 288], strides = [1, 1]} : vector<9x326xf32> to vector<1x288xf32>
    %20 = arith.addf %18, %19 : vector<1x288xf32>
    %21 = vector.extract_strided_slice %5 {offsets = [8, 38], sizes = [1, 288], strides = [1, 1]} : vector<9x326xf32> to vector<1x288xf32>
    %22 = arith.addf %20, %21 : vector<1x288xf32>
    %23 = vector.broadcast %0 : f32 to vector<1x288xf32>
    %24 = arith.addf %22, %23 : vector<1x288xf32>
    %c0_6 = arith.constant 0 : index
    %c0_7 = arith.constant 0 : index
    %c0_8 = arith.constant 0 : index
    %25 = vector.load %arg2[%c0_6, %c0_7, %c0_8] : memref<1x8x32xbf16, #tpu.memory_space<vmem>>, vector<1x8x32xbf16>
    %26 = vector.shape_cast %25 : vector<1x8x32xbf16> to vector<8x32xbf16>
    %27 = arith.extf %26 : vector<8x32xbf16> to vector<8x32xf32>
    %c0_9 = arith.constant 0 : index
    %c0_10 = arith.constant 0 : index
    %c0_11 = arith.constant 0 : index
    %28 = vector.load %arg4[%c0_9, %c0_10, %c0_11] : memref<3x32x18xf32, #tpu.memory_space<vmem>>, vector<1x32x18xf32>
    %29 = vector.shape_cast %28 : vector<1x32x18xf32> to vector<32x18xf32>
    %cst_12 = arith.constant dense<0.000000e+00> : vector<8x18xf32>
    %30 = tpu.matmul %27, %29, %cst_12 {dimension_numbers = #tpu.dot_dimension_numbers<[1], [0], [0], [1], [0, 0, 1, 1], [], []>} : vector<8x32xf32>, vector<32x18xf32>, vector<8x18xf32> -> vector<8x18xf32>
    %c0_13 = arith.constant 0 : index
    %c0_14 = arith.constant 0 : index
    %c0_15 = arith.constant 0 : index
    %31 = vector.load %arg5[%c0_13, %c0_14, %c0_15] : memref<3x16x8xf32, #tpu.memory_space<vmem>>, vector<1x16x8xf32>
    %32 = vector.shape_cast %31 : vector<1x16x8xf32> to vector<16x8xf32>
    %cst_16 = arith.constant dense<0.000000e+00> : vector<16x18xf32>
    %33 = tpu.matmul %32, %30, %cst_16 {dimension_numbers = #tpu.dot_dimension_numbers<[1], [0], [0], [1], [0, 0, 1, 1], [], []>} : vector<16x8xf32>, vector<8x18xf32>, vector<16x18xf32> -> vector<16x18xf32>
    %c1 = arith.constant 1 : index
    %c0_17 = arith.constant 0 : index
    %c0_18 = arith.constant 0 : index
    %34 = vector.load %arg4[%c1, %c0_17, %c0_18] : memref<3x32x18xf32, #tpu.memory_space<vmem>>, vector<1x32x18xf32>
    %35 = vector.shape_cast %34 : vector<1x32x18xf32> to vector<32x18xf32>
    %cst_19 = arith.constant dense<0.000000e+00> : vector<8x18xf32>
    %36 = tpu.matmul %27, %35, %cst_19 {dimension_numbers = #tpu.dot_dimension_numbers<[1], [0], [0], [1], [0, 0, 1, 1], [], []>} : vector<8x32xf32>, vector<32x18xf32>, vector<8x18xf32> -> vector<8x18xf32>
    %c1_20 = arith.constant 1 : index
    %c0_21 = arith.constant 0 : index
    %c0_22 = arith.constant 0 : index
    %37 = vector.load %arg5[%c1_20, %c0_21, %c0_22] : memref<3x16x8xf32, #tpu.memory_space<vmem>>, vector<1x16x8xf32>
    %38 = vector.shape_cast %37 : vector<1x16x8xf32> to vector<16x8xf32>
    %cst_23 = arith.constant dense<0.000000e+00> : vector<16x18xf32>
    %39 = tpu.matmul %38, %36, %cst_23 {dimension_numbers = #tpu.dot_dimension_numbers<[1], [0], [0], [1], [0, 0, 1, 1], [], []>} : vector<16x8xf32>, vector<8x18xf32>, vector<16x18xf32> -> vector<16x18xf32>
    %40 = arith.addf %33, %39 : vector<16x18xf32>
    %c2 = arith.constant 2 : index
    %c0_24 = arith.constant 0 : index
    %c0_25 = arith.constant 0 : index
    %41 = vector.load %arg4[%c2, %c0_24, %c0_25] : memref<3x32x18xf32, #tpu.memory_space<vmem>>, vector<1x32x18xf32>
    %42 = vector.shape_cast %41 : vector<1x32x18xf32> to vector<32x18xf32>
    %cst_26 = arith.constant dense<0.000000e+00> : vector<8x18xf32>
    %43 = tpu.matmul %27, %42, %cst_26 {dimension_numbers = #tpu.dot_dimension_numbers<[1], [0], [0], [1], [0, 0, 1, 1], [], []>} : vector<8x32xf32>, vector<32x18xf32>, vector<8x18xf32> -> vector<8x18xf32>
    %c2_27 = arith.constant 2 : index
    %c0_28 = arith.constant 0 : index
    %c0_29 = arith.constant 0 : index
    %44 = vector.load %arg5[%c2_27, %c0_28, %c0_29] : memref<3x16x8xf32, #tpu.memory_space<vmem>>, vector<1x16x8xf32>
    %45 = vector.shape_cast %44 : vector<1x16x8xf32> to vector<16x8xf32>
    %cst_30 = arith.constant dense<0.000000e+00> : vector<16x18xf32>
    %46 = tpu.matmul %45, %43, %cst_30 {dimension_numbers = #tpu.dot_dimension_numbers<[1], [0], [0], [1], [0, 0, 1, 1], [], []>} : vector<16x8xf32>, vector<8x18xf32>, vector<16x18xf32> -> vector<16x18xf32>
    %47 = arith.addf %40, %46 : vector<16x18xf32>
    %c0_31 = arith.constant 0 : index
    %c0_32 = arith.constant 0 : index
    %c0_33 = arith.constant 0 : index
    %48 = vector.load %arg7[%c0_31, %c0_32, %c0_33] : memref<1x1x288xf32, #tpu.memory_space<vmem>>, vector<1x1x288xf32>
    %49 = vector.shape_cast %48 : vector<1x1x288xf32> to vector<1x288xf32>
    %50 = vector.shape_cast %24 : vector<1x288xf32> to vector<1x1x288xf32>
    tpu.vector_store %arg7[%c0_31, %c0_32, %c0_33], %50 {strides = array<i32>} : memref<1x1x288xf32, #tpu.memory_space<vmem>>, vector<1x1x288xf32>,
    %c0_34 = arith.constant 0 : index
    %c0_35 = arith.constant 0 : index
    %c0_36 = arith.constant 0 : index
    %51 = vector.load %arg7[%c0_34, %c0_35, %c0_36] : memref<1x1x288xf32, #tpu.memory_space<vmem>>, vector<1x1x18xf32>
    %52 = vector.shape_cast %51 : vector<1x1x18xf32> to vector<1x18xf32>
    %53 = vector.extract_strided_slice %47 {offsets = [0, 0], sizes = [1, 18], strides = [1, 1]} : vector<16x18xf32> to vector<1x18xf32>
    %54 = arith.addf %52, %53 : vector<1x18xf32>
    %c0_37 = arith.constant 0 : index
    %c0_38 = arith.constant 0 : index
    %c0_39 = arith.constant 0 : index
    %55 = vector.load %arg7[%c0_37, %c0_38, %c0_39] : memref<1x1x288xf32, #tpu.memory_space<vmem>>, vector<1x1x18xf32>
    %56 = vector.shape_cast %55 : vector<1x1x18xf32> to vector<1x18xf32>
    %57 = vector.shape_cast %54 : vector<1x18xf32> to vector<1x1x18xf32>
    tpu.vector_store %arg7[%c0_37, %c0_38, %c0_39], %57 {strides = array<i32>} : memref<1x1x288xf32, #tpu.memory_space<vmem>>, vector<1x1x18xf32>,
    %c0_40 = arith.constant 0 : index
    %c0_41 = arith.constant 0 : index
    %c18 = arith.constant 18 : index
    %58 = vector.load %arg7[%c0_40, %c0_41, %c18] : memref<1x1x288xf32, #tpu.memory_space<vmem>>, vector<1x1x18xf32>
    %59 = vector.shape_cast %58 : vector<1x1x18xf32> to vector<1x18xf32>
    %60 = vector.extract_strided_slice %47 {offsets = [1, 0], sizes = [1, 18], strides = [1, 1]} : vector<16x18xf32> to vector<1x18xf32>
    %61 = arith.addf %59, %60 : vector<1x18xf32>
    %c0_42 = arith.constant 0 : index
    %c0_43 = arith.constant 0 : index
    %c18_44 = arith.constant 18 : index
    %62 = vector.load %arg7[%c0_42, %c0_43, %c18_44] : memref<1x1x288xf32, #tpu.memory_space<vmem>>, vector<1x1x18xf32>
    %63 = vector.shape_cast %62 : vector<1x1x18xf32> to vector<1x18xf32>
    %64 = vector.shape_cast %61 : vector<1x18xf32> to vector<1x1x18xf32>
    tpu.vector_store %arg7[%c0_42, %c0_43, %c18_44], %64 {strides = array<i32>} : memref<1x1x288xf32, #tpu.memory_space<vmem>>, vector<1x1x18xf32>,
    %c0_45 = arith.constant 0 : index
    %c0_46 = arith.constant 0 : index
    %c36 = arith.constant 36 : index
    %65 = vector.load %arg7[%c0_45, %c0_46, %c36] : memref<1x1x288xf32, #tpu.memory_space<vmem>>, vector<1x1x18xf32>
    %66 = vector.shape_cast %65 : vector<1x1x18xf32> to vector<1x18xf32>
    %67 = vector.extract_strided_slice %47 {offsets = [2, 0], sizes = [1, 18], strides = [1, 1]} : vector<16x18xf32> to vector<1x18xf32>
    %68 = arith.addf %66, %67 : vector<1x18xf32>
    %c0_47 = arith.constant 0 : index
    %c0_48 = arith.constant 0 : index
    %c36_49 = arith.constant 36 : index
    %69 = vector.load %arg7[%c0_47, %c0_48, %c36_49] : memref<1x1x288xf32, #tpu.memory_space<vmem>>, vector<1x1x18xf32>
    %70 = vector.shape_cast %69 : vector<1x1x18xf32> to vector<1x18xf32>
    %71 = vector.shape_cast %68 : vector<1x18xf32> to vector<1x1x18xf32>
    tpu.vector_store %arg7[%c0_47, %c0_48, %c36_49], %71 {strides = array<i32>} : memref<1x1x288xf32, #tpu.memory_space<vmem>>, vector<1x1x18xf32>,
    %c0_50 = arith.constant 0 : index
    %c0_51 = arith.constant 0 : index
    %c54 = arith.constant 54 : index
    %72 = vector.load %arg7[%c0_50, %c0_51, %c54] : memref<1x1x288xf32, #tpu.memory_space<vmem>>, vector<1x1x18xf32>
    %73 = vector.shape_cast %72 : vector<1x1x18xf32> to vector<1x18xf32>
    %74 = vector.extract_strided_slice %47 {offsets = [3, 0], sizes = [1, 18], strides = [1, 1]} : vector<16x18xf32> to vector<1x18xf32>
    %75 = arith.addf %73, %74 : vector<1x18xf32>
    %c0_52 = arith.constant 0 : index
    %c0_53 = arith.constant 0 : index
    %c54_54 = arith.constant 54 : index
    %76 = vector.load %arg7[%c0_52, %c0_53, %c54_54] : memref<1x1x288xf32, #tpu.memory_space<vmem>>, vector<1x1x18xf32>
    %77 = vector.shape_cast %76 : vector<1x1x18xf32> to vector<1x18xf32>
    %78 = vector.shape_cast %75 : vector<1x18xf32> to vector<1x1x18xf32>
    tpu.vector_store %arg7[%c0_52, %c0_53, %c54_54], %78 {strides = array<i32>} : memref<1x1x288xf32, #tpu.memory_space<vmem>>, vector<1x1x18xf32>,
    %c0_55 = arith.constant 0 : index
    %c0_56 = arith.constant 0 : index
    %c72 = arith.constant 72 : index
    %79 = vector.load %arg7[%c0_55, %c0_56, %c72] : memref<1x1x288xf32, #tpu.memory_space<vmem>>, vector<1x1x18xf32>
    %80 = vector.shape_cast %79 : vector<1x1x18xf32> to vector<1x18xf32>
    %81 = vector.extract_strided_slice %47 {offsets = [4, 0], sizes = [1, 18], strides = [1, 1]} : vector<16x18xf32> to vector<1x18xf32>
    %82 = arith.addf %80, %81 : vector<1x18xf32>
    %c0_57 = arith.constant 0 : index
    %c0_58 = arith.constant 0 : index
    %c72_59 = arith.constant 72 : index
    %83 = vector.load %arg7[%c0_57, %c0_58, %c72_59] : memref<1x1x288xf32, #tpu.memory_space<vmem>>, vector<1x1x18xf32>
    %84 = vector.shape_cast %83 : vector<1x1x18xf32> to vector<1x18xf32>
    %85 = vector.shape_cast %82 : vector<1x18xf32> to vector<1x1x18xf32>
    tpu.vector_store %arg7[%c0_57, %c0_58, %c72_59], %85 {strides = array<i32>} : memref<1x1x288xf32, #tpu.memory_space<vmem>>, vector<1x1x18xf32>,
    %c0_60 = arith.constant 0 : index
    %c0_61 = arith.constant 0 : index
    %c90 = arith.constant 90 : index
    %86 = vector.load %arg7[%c0_60, %c0_61, %c90] : memref<1x1x288xf32, #tpu.memory_space<vmem>>, vector<1x1x18xf32>
    %87 = vector.shape_cast %86 : vector<1x1x18xf32> to vector<1x18xf32>
    %88 = vector.extract_strided_slice %47 {offsets = [5, 0], sizes = [1, 18], strides = [1, 1]} : vector<16x18xf32> to vector<1x18xf32>
    %89 = arith.addf %87, %88 : vector<1x18xf32>
    %c0_62 = arith.constant 0 : index
    %c0_63 = arith.constant 0 : index
    %c90_64 = arith.constant 90 : index
    %90 = vector.load %arg7[%c0_62, %c0_63, %c90_64] : memref<1x1x288xf32, #tpu.memory_space<vmem>>, vector<1x1x18xf32>
    %91 = vector.shape_cast %90 : vector<1x1x18xf32> to vector<1x18xf32>
    %92 = vector.shape_cast %89 : vector<1x18xf32> to vector<1x1x18xf32>
    tpu.vector_store %arg7[%c0_62, %c0_63, %c90_64], %92 {strides = array<i32>} : memref<1x1x288xf32, #tpu.memory_space<vmem>>, vector<1x1x18xf32>,
    %c0_65 = arith.constant 0 : index
    %c0_66 = arith.constant 0 : index
    %c108 = arith.constant 108 : index
    %93 = vector.load %arg7[%c0_65, %c0_66, %c108] : memref<1x1x288xf32, #tpu.memory_space<vmem>>, vector<1x1x18xf32>
    %94 = vector.shape_cast %93 : vector<1x1x18xf32> to vector<1x18xf32>
    %95 = vector.extract_strided_slice %47 {offsets = [6, 0], sizes = [1, 18], strides = [1, 1]} : vector<16x18xf32> to vector<1x18xf32>
    %96 = arith.addf %94, %95 : vector<1x18xf32>
    %c0_67 = arith.constant 0 : index
    %c0_68 = arith.constant 0 : index
    %c108_69 = arith.constant 108 : index
    %97 = vector.load %arg7[%c0_67, %c0_68, %c108_69] : memref<1x1x288xf32, #tpu.memory_space<vmem>>, vector<1x1x18xf32>
    %98 = vector.shape_cast %97 : vector<1x1x18xf32> to vector<1x18xf32>
    %99 = vector.shape_cast %96 : vector<1x18xf32> to vector<1x1x18xf32>
    tpu.vector_store %arg7[%c0_67, %c0_68, %c108_69], %99 {strides = array<i32>} : memref<1x1x288xf32, #tpu.memory_space<vmem>>, vector<1x1x18xf32>,
    %c0_70 = arith.constant 0 : index
    %c0_71 = arith.constant 0 : index
    %c126 = arith.constant 126 : index
    %100 = vector.load %arg7[%c0_70, %c0_71, %c126] : memref<1x1x288xf32, #tpu.memory_space<vmem>>, vector<1x1x18xf32>
    %101 = vector.shape_cast %100 : vector<1x1x18xf32> to vector<1x18xf32>
    %102 = vector.extract_strided_slice %47 {offsets = [7, 0], sizes = [1, 18], strides = [1, 1]} : vector<16x18xf32> to vector<1x18xf32>
    %103 = arith.addf %101, %102 : vector<1x18xf32>
    %c0_72 = arith.constant 0 : index
    %c0_73 = arith.constant 0 : index
    %c126_74 = arith.constant 126 : index
    %104 = vector.load %arg7[%c0_72, %c0_73, %c126_74] : memref<1x1x288xf32, #tpu.memory_space<vmem>>, vector<1x1x18xf32>
    %105 = vector.shape_cast %104 : vector<1x1x18xf32> to vector<1x18xf32>
    %106 = vector.shape_cast %103 : vector<1x18xf32> to vector<1x1x18xf32>
    tpu.vector_store %arg7[%c0_72, %c0_73, %c126_74], %106 {strides = array<i32>} : memref<1x1x288xf32, #tpu.memory_space<vmem>>, vector<1x1x18xf32>,
    %c0_75 = arith.constant 0 : index
    %c0_76 = arith.constant 0 : index
    %c144 = arith.constant 144 : index
    %107 = vector.load %arg7[%c0_75, %c0_76, %c144] : memref<1x1x288xf32, #tpu.memory_space<vmem>>, vector<1x1x18xf32>
    %108 = vector.shape_cast %107 : vector<1x1x18xf32> to vector<1x18xf32>
    %109 = vector.extract_strided_slice %47 {offsets = [8, 0], sizes = [1, 18], strides = [1, 1]} : vector<16x18xf32> to vector<1x18xf32>
    %110 = arith.addf %108, %109 : vector<1x18xf32>
    %c0_77 = arith.constant 0 : index
    %c0_78 = arith.constant 0 : index
    %c144_79 = arith.constant 144 : index
    %111 = vector.load %arg7[%c0_77, %c0_78, %c144_79] : memref<1x1x288xf32, #tpu.memory_space<vmem>>, vector<1x1x18xf32>
    %112 = vector.shape_cast %111 : vector<1x1x18xf32> to vector<1x18xf32>
    %113 = vector.shape_cast %110 : vector<1x18xf32> to vector<1x1x18xf32>
    tpu.vector_store %arg7[%c0_77, %c0_78, %c144_79], %113 {strides = array<i32>} : memref<1x1x288xf32, #tpu.memory_space<vmem>>, vector<1x1x18xf32>,
    %c0_80 = arith.constant 0 : index
    %c0_81 = arith.constant 0 : index
    %c162 = arith.constant 162 : index
    %114 = vector.load %arg7[%c0_80, %c0_81, %c162] : memref<1x1x288xf32, #tpu.memory_space<vmem>>, vector<1x1x18xf32>
    %115 = vector.shape_cast %114 : vector<1x1x18xf32> to vector<1x18xf32>
    %116 = vector.extract_strided_slice %47 {offsets = [9, 0], sizes = [1, 18], strides = [1, 1]} : vector<16x18xf32> to vector<1x18xf32>
    %117 = arith.addf %115, %116 : vector<1x18xf32>
    %c0_82 = arith.constant 0 : index
    %c0_83 = arith.constant 0 : index
    %c162_84 = arith.constant 162 : index
    %118 = vector.load %arg7[%c0_82, %c0_83, %c162_84] : memref<1x1x288xf32, #tpu.memory_space<vmem>>, vector<1x1x18xf32>
    %119 = vector.shape_cast %118 : vector<1x1x18xf32> to vector<1x18xf32>
    %120 = vector.shape_cast %117 : vector<1x18xf32> to vector<1x1x18xf32>
    tpu.vector_store %arg7[%c0_82, %c0_83, %c162_84], %120 {strides = array<i32>} : memref<1x1x288xf32, #tpu.memory_space<vmem>>, vector<1x1x18xf32>,
    %c0_85 = arith.constant 0 : index
    %c0_86 = arith.constant 0 : index
    %c180 = arith.constant 180 : index
    %121 = vector.load %arg7[%c0_85, %c0_86, %c180] : memref<1x1x288xf32, #tpu.memory_space<vmem>>, vector<1x1x18xf32>
    %122 = vector.shape_cast %121 : vector<1x1x18xf32> to vector<1x18xf32>
    %123 = vector.extract_strided_slice %47 {offsets = [10, 0], sizes = [1, 18], strides = [1, 1]} : vector<16x18xf32> to vector<1x18xf32>
    %124 = arith.addf %122, %123 : vector<1x18xf32>
    %c0_87 = arith.constant 0 : index
    %c0_88 = arith.constant 0 : index
    %c180_89 = arith.constant 180 : index
    %125 = vector.load %arg7[%c0_87, %c0_88, %c180_89] : memref<1x1x288xf32, #tpu.memory_space<vmem>>, vector<1x1x18xf32>
    %126 = vector.shape_cast %125 : vector<1x1x18xf32> to vector<1x18xf32>
    %127 = vector.shape_cast %124 : vector<1x18xf32> to vector<1x1x18xf32>
    tpu.vector_store %arg7[%c0_87, %c0_88, %c180_89], %127 {strides = array<i32>} : memref<1x1x288xf32, #tpu.memory_space<vmem>>, vector<1x1x18xf32>,
    %c0_90 = arith.constant 0 : index
    %c0_91 = arith.constant 0 : index
    %c198 = arith.constant 198 : index
    %128 = vector.load %arg7[%c0_90, %c0_91, %c198] : memref<1x1x288xf32, #tpu.memory_space<vmem>>, vector<1x1x18xf32>
    %129 = vector.shape_cast %128 : vector<1x1x18xf32> to vector<1x18xf32>
    %130 = vector.extract_strided_slice %47 {offsets = [11, 0], sizes = [1, 18], strides = [1, 1]} : vector<16x18xf32> to vector<1x18xf32>
    %131 = arith.addf %129, %130 : vector<1x18xf32>
    %c0_92 = arith.constant 0 : index
    %c0_93 = arith.constant 0 : index
    %c198_94 = arith.constant 198 : index
    %132 = vector.load %arg7[%c0_92, %c0_93, %c198_94] : memref<1x1x288xf32, #tpu.memory_space<vmem>>, vector<1x1x18xf32>
    %133 = vector.shape_cast %132 : vector<1x1x18xf32> to vector<1x18xf32>
    %134 = vector.shape_cast %131 : vector<1x18xf32> to vector<1x1x18xf32>
    tpu.vector_store %arg7[%c0_92, %c0_93, %c198_94], %134 {strides = array<i32>} : memref<1x1x288xf32, #tpu.memory_space<vmem>>, vector<1x1x18xf32>,
    %c0_95 = arith.constant 0 : index
    %c0_96 = arith.constant 0 : index
    %c216 = arith.constant 216 : index
    %135 = vector.load %arg7[%c0_95, %c0_96, %c216] : memref<1x1x288xf32, #tpu.memory_space<vmem>>, vector<1x1x18xf32>
    %136 = vector.shape_cast %135 : vector<1x1x18xf32> to vector<1x18xf32>
    %137 = vector.extract_strided_slice %47 {offsets = [12, 0], sizes = [1, 18], strides = [1, 1]} : vector<16x18xf32> to vector<1x18xf32>
    %138 = arith.addf %136, %137 : vector<1x18xf32>
    %c0_97 = arith.constant 0 : index
    %c0_98 = arith.constant 0 : index
    %c216_99 = arith.constant 216 : index
    %139 = vector.load %arg7[%c0_97, %c0_98, %c216_99] : memref<1x1x288xf32, #tpu.memory_space<vmem>>, vector<1x1x18xf32>
    %140 = vector.shape_cast %139 : vector<1x1x18xf32> to vector<1x18xf32>
    %141 = vector.shape_cast %138 : vector<1x18xf32> to vector<1x1x18xf32>
    tpu.vector_store %arg7[%c0_97, %c0_98, %c216_99], %141 {strides = array<i32>} : memref<1x1x288xf32, #tpu.memory_space<vmem>>, vector<1x1x18xf32>,
    %c0_100 = arith.constant 0 : index
    %c0_101 = arith.constant 0 : index
    %c234 = arith.constant 234 : index
    %142 = vector.load %arg7[%c0_100, %c0_101, %c234] : memref<1x1x288xf32, #tpu.memory_space<vmem>>, vector<1x1x18xf32>
    %143 = vector.shape_cast %142 : vector<1x1x18xf32> to vector<1x18xf32>
    %144 = vector.extract_strided_slice %47 {offsets = [13, 0], sizes = [1, 18], strides = [1, 1]} : vector<16x18xf32> to vector<1x18xf32>
    %145 = arith.addf %143, %144 : vector<1x18xf32>
    %c0_102 = arith.constant 0 : index
    %c0_103 = arith.constant 0 : index
    %c234_104 = arith.constant 234 : index
    %146 = vector.load %arg7[%c0_102, %c0_103, %c234_104] : memref<1x1x288xf32, #tpu.memory_space<vmem>>, vector<1x1x18xf32>
    %147 = vector.shape_cast %146 : vector<1x1x18xf32> to vector<1x18xf32>
    %148 = vector.shape_cast %145 : vector<1x18xf32> to vector<1x1x18xf32>
    tpu.vector_store %arg7[%c0_102, %c0_103, %c234_104], %148 {strides = array<i32>} : memref<1x1x288xf32, #tpu.memory_space<vmem>>, vector<1x1x18xf32>,
    %c0_105 = arith.constant 0 : index
    %c0_106 = arith.constant 0 : index
    %c252 = arith.constant 252 : index
    %149 = vector.load %arg7[%c0_105, %c0_106, %c252] : memref<1x1x288xf32, #tpu.memory_space<vmem>>, vector<1x1x18xf32>
    %150 = vector.shape_cast %149 : vector<1x1x18xf32> to vector<1x18xf32>
    %151 = vector.extract_strided_slice %47 {offsets = [14, 0], sizes = [1, 18], strides = [1, 1]} : vector<16x18xf32> to vector<1x18xf32>
    %152 = arith.addf %150, %151 : vector<1x18xf32>
    %c0_107 = arith.constant 0 : index
    %c0_108 = arith.constant 0 : index
    %c252_109 = arith.constant 252 : index
    %153 = vector.load %arg7[%c0_107, %c0_108, %c252_109] : memref<1x1x288xf32, #tpu.memory_space<vmem>>, vector<1x1x18xf32>
    %154 = vector.shape_cast %153 : vector<1x1x18xf32> to vector<1x18xf32>
    %155 = vector.shape_cast %152 : vector<1x18xf32> to vector<1x1x18xf32>
    tpu.vector_store %arg7[%c0_107, %c0_108, %c252_109], %155 {strides = array<i32>} : memref<1x1x288xf32, #tpu.memory_space<vmem>>, vector<1x1x18xf32>,
    %c0_110 = arith.constant 0 : index
    %c0_111 = arith.constant 0 : index
    %c270 = arith.constant 270 : index
    %156 = vector.load %arg7[%c0_110, %c0_111, %c270] : memref<1x1x288xf32, #tpu.memory_space<vmem>>, vector<1x1x18xf32>
    %157 = vector.shape_cast %156 : vector<1x1x18xf32> to vector<1x18xf32>
    %158 = vector.extract_strided_slice %47 {offsets = [15, 0], sizes = [1, 18], strides = [1, 1]} : vector<16x18xf32> to vector<1x18xf32>
    %159 = arith.addf %157, %158 : vector<1x18xf32>
    %c0_112 = arith.constant 0 : index
    %c0_113 = arith.constant 0 : index
    %c270_114 = arith.constant 270 : index
    %160 = vector.load %arg7[%c0_112, %c0_113, %c270_114] : memref<1x1x288xf32, #tpu.memory_space<vmem>>, vector<1x1x18xf32>
    %161 = vector.shape_cast %160 : vector<1x1x18xf32> to vector<1x18xf32>
    %162 = vector.shape_cast %159 : vector<1x18xf32> to vector<1x1x18xf32>
    tpu.vector_store %arg7[%c0_112, %c0_113, %c270_114], %162 {strides = array<i32>} : memref<1x1x288xf32, #tpu.memory_space<vmem>>, vector<1x1x18xf32>,
    %c0_115 = arith.constant 0 : index
    %c0_116 = arith.constant 0 : index
    %c0_117 = arith.constant 0 : index
    %163 = vector.load %arg7[%c0_115, %c0_116, %c0_117] : memref<1x1x288xf32, #tpu.memory_space<vmem>>, vector<1x1x288xf32>
    %164 = vector.shape_cast %163 : vector<1x1x288xf32> to vector<1x288xf32>
    %cst_118 = arith.constant 0.000000e+00 : f32
    %165 = vector.broadcast %cst_118 : f32 to vector<1x288xf32>
    %166 = arith.subf %165, %164 : vector<1x288xf32>
    %167 = math.exp %166 : vector<1x288xf32>
    %cst_119 = arith.constant 1.000000e+00 : f32
    %168 = vector.broadcast %cst_119 : f32 to vector<1x288xf32>
    %169 = arith.addf %168, %167 : vector<1x288xf32>
    %170 = tpu.reciprocal %169 {approx = true} : vector<1x288xf32> -> vector<1x288xf32>
    %c0_120 = arith.constant 0 : index
    %c0_121 = arith.constant 0 : index
    %c0_122 = arith.constant 0 : index
    %171 = vector.load %arg7[%c0_120, %c0_121, %c0_122] : memref<1x1x288xf32, #tpu.memory_space<vmem>>, vector<1x1x288xf32>
    %172 = vector.shape_cast %171 : vector<1x1x288xf32> to vector<1x288xf32>
    %173 = vector.shape_cast %170 : vector<1x288xf32> to vector<1x1x288xf32>
    tpu.vector_store %arg7[%c0_120, %c0_121, %c0_122], %173 {strides = array<i32>} : memref<1x1x288xf32, #tpu.memory_space<vmem>>, vector<1x1x288xf32>,
    return
  }
  func.func @transform_0(%arg0: i32) -> (i32, i32, i32) {
    %c0_i32 = arith.constant 0 : i32
    %c0_i32_0 = arith.constant 0 : i32
    %c0_i32_1 = arith.constant 0 : i32
    return %arg0, %c0_i32, %c0_i32_0 : i32, i32, i32
  }
  func.func @transform_1(%arg0: i32) -> (i32, i32, i32) {
    %c0_i32 = arith.constant 0 : i32
    %c0_i32_0 = arith.constant 0 : i32
    %c0_i32_1 = arith.constant 0 : i32
    return %arg0, %c0_i32, %c0_i32_0 : i32, i32, i32
  }
  func.func @transform_2(%arg0: i32) -> (i32, i32) {
    %c0_i32 = arith.constant 0 : i32
    %c0_i32_0 = arith.constant 0 : i32
    %c0_i32_1 = arith.constant 0 : i32
    return %c0_i32, %c0_i32_0 : i32, i32
  }
  func.func @transform_3(%arg0: i32) -> (i32, i32, i32) {
    %c0_i32 = arith.constant 0 : i32
    %c0_i32_0 = arith.constant 0 : i32
    %c0_i32_1 = arith.constant 0 : i32
    %c0_i32_2 = arith.constant 0 : i32
    return %c0_i32, %c0_i32_0, %c0_i32_1 : i32, i32, i32
  }
  func.func @transform_4(%arg0: i32) -> (i32, i32, i32) {
    %c0_i32 = arith.constant 0 : i32
    %c0_i32_0 = arith.constant 0 : i32
    %c0_i32_1 = arith.constant 0 : i32
    %c0_i32_2 = arith.constant 0 : i32
    return %c0_i32, %c0_i32_0, %c0_i32_1 : i32, i32, i32
  }
  func.func @transform_5(%arg0: i32) -> (i32, i32) {
    %c0_i32 = arith.constant 0 : i32
    %c0_i32_0 = arith.constant 0 : i32
    %c0_i32_1 = arith.constant 0 : i32
    return %c0_i32, %c0_i32_0 : i32, i32
  }
  func.func @transform_6(%arg0: i32) -> (i32, i32, i32) {
    %c0_i32 = arith.constant 0 : i32
    %c0_i32_0 = arith.constant 0 : i32
    %c0_i32_1 = arith.constant 0 : i32
    return %arg0, %c0_i32, %c0_i32_0 : i32, i32, i32
  }
}

</mosaic_0001>

<llo_original>
// kernel: forward.1
$region0: #{forward.1}
  #allocation0 [shape = 'u32[]', space=smem, size = 0x4, offset = 0x4, fixed_abs, tag = 'smem constant byte address 0x4 - core index']
  #allocation1 [shape = 'u32[144,128]{1,0:T(1,128)}', space=vmem, size = 0x12000, scoped, tag = 'internal scratch']
  #allocation2 [shape = 'f32[1,1]{1,0:T(1,128)S(6)}', space=smem, size = 0x200, scoped, tag = 'scoped memory for forward.1']
  %s0 = inlined_call_operand.vmem [shape: bf16[2,4,326], index: 0, kind: input, shape index: {}]
  %s1 = inlined_call_operand.vmem [shape: bf16[2,8,32], index: 1, kind: input, shape index: {}]
  %s2 = inlined_call_operand.vmem [shape: f32[9,4], index: 2, kind: input, shape index: {}]
  %s3 = inlined_call_operand.vmem [shape: f32[3,32,18], index: 3, kind: input, shape index: {}]
  %s4 = inlined_call_operand.vmem [shape: f32[3,16,8], index: 4, kind: input, shape index: {}]
  %s5 = inlined_call_operand.<no memory space> [shape: f32[1,1], index: 5, kind: input, shape index: {}]
  %s6 = inlined_call_operand.vmem [shape: f32[2,1,288], index: 6, kind: output, shape index: {}]
  %s7 = sld [smem:[#allocation0]]
  $region57: #{forward.1} parent=0
    _
  %s9 = ssub.s32 1, %s7
  %s10 = scalar_select 0, %s9, %s7
  %11 = sst [smem:[#allocation2]] %s5
  loop: start=0, step=1, limit=4
  $region2: #{forward.1} parent=0 // loop_pre_header
    _
  $region3: #{forward.1} parent=0 // loop_header
    %s13 = sphi 0, %s17
    %p14 = scmp.ge.s32.totalorder %s13, 4
    %s23 = sphi 0, %s25
    %s26 = sphi 0, %s23
    %s27 = sphi 0, %s26
    %s43 = sphi 0, %s27
    %s49 = sphi 0, %s51
    %s52 = sphi 0, %s49
    %s53 = sphi 0, %s52
    %s69 = sphi 0, %s53
    %s73 = sphi 0, %s73
    %s75 = sphi 0, %s73
    %s76 = sphi 0, %s75
    %s90 = sphi 0, %s76
    %s94 = sphi 0, %s94
    %s96 = sphi 0, %s94
    %s97 = sphi 0, %s96
    %s111 = sphi 0, %s97
    %s115 = sphi 0, %s115
    %s117 = sphi 0, %s115
    %s118 = sphi 0, %s117
    %s132 = sphi 0, %s118
    %s136 = sphi 0, %s136
    %s138 = sphi 0, %s136
    %s139 = sphi 0, %s138
    %s153 = sphi 0, %s139
    %s159 = sphi 0, %s161
    %s162 = sphi 0, %s159
    %s163 = sphi 0, %s162
    %s179 = sphi 0, %s163
  $region4: #{forward.1} parent=0 // loop_header_branch
    %16 = sbr.rel (%p14) target = $region8
  $region5: #{forward.1} parent=0 // loop_body
    %s18 = ssub.s32 %s13, 1
    %s19 = ssub.s32 %s13, 2
    %s20 = sadd.s32 %s13, 1
    %s21 = ssub.s32 %s13, %s20
    %p22 = scmp.eq.s32.totalorder %s21, 0
    %s24 = sadd.s32 %s23, 1
    %s25 = scalar_select %p22, %s23, %s24
    %p28 = pneg %p22
    %p29 = scmp.eq.s32.totalorder %s13, 1
    %p30 = por %p28, %p29
    %p31 = scmp.ne.s32.totalorder %s23, %s26
    %p32 = scmp.eq.s32.totalorder %s13, 0
    %p33 = por %p31, %p32
    %p34 = scmp.ne.s32.totalorder %s23, %s26
    %p35 = scmp.eq.s32.totalorder %s18, 1
    %p36 = por %p34, %p35
    %p37 = scmp.ne.s32.totalorder %s26, %s27
    %p38 = scmp.eq.s32.totalorder %s18, 0
    %p39 = por %p37, %p38
    %p40 = scmp.ne.s32.totalorder %s26, %s27
    %p41 = scmp.eq.s32.totalorder %s19, 1
    %p42 = por %p40, %p41
    %p44 = scmp.ne.s32.totalorder %s27, %s43
    %p45 = scmp.eq.s32.totalorder %s19, 0
    %p46 = por %p44, %p45
    %s47 = ssub.s32 %s13, %s20
    %p48 = scmp.eq.s32.totalorder %s47, 0
    %s50 = sadd.s32 %s49, 1
    %s51 = scalar_select %p48, %s49, %s50
    %p54 = pneg %p48
    %p55 = scmp.eq.s32.totalorder %s13, 1
    %p56 = por %p54, %p55
    %p57 = scmp.ne.s32.totalorder %s49, %s52
    %p58 = scmp.eq.s32.totalorder %s13, 0
    %p59 = por %p57, %p58
    %p60 = scmp.ne.s32.totalorder %s49, %s52
    %p61 = scmp.eq.s32.totalorder %s18, 1
    %p62 = por %p60, %p61
    %p63 = scmp.ne.s32.totalorder %s52, %s53
    %p64 = scmp.eq.s32.totalorder %s18, 0
    %p65 = por %p63, %p64
    %p66 = scmp.ne.s32.totalorder %s52, %s53
    %p67 = scmp.eq.s32.totalorder %s19, 1
    %p68 = por %p66, %p67
    %p70 = scmp.ne.s32.totalorder %s53, %s69
    %p71 = scmp.eq.s32.totalorder %s19, 0
    %p72 = por %p70, %p71
    %s74 = sadd.s32 %s73, 1
    %p77 = scmp.eq.s32.totalorder %s13, 1
    %p78 = scmp.ne.s32.totalorder %s73, %s75
    %p79 = scmp.eq.s32.totalorder %s13, 0
    %p80 = por %p78, %p79
    %p81 = scmp.ne.s32.totalorder %s73, %s75
    %p82 = scmp.eq.s32.totalorder %s18, 1
    %p83 = por %p81, %p82
    %p84 = scmp.ne.s32.totalorder %s75, %s76
    %p85 = scmp.eq.s32.totalorder %s18, 0
    %p86 = por %p84, %p85
    %p87 = scmp.ne.s32.totalorder %s75, %s76
    %p88 = scmp.eq.s32.totalorder %s19, 1
    %p89 = por %p87, %p88
    %p91 = scmp.ne.s32.totalorder %s76, %s90
    %p92 = scmp.eq.s32.totalorder %s19, 0
    %p93 = por %p91, %p92
    %s95 = sadd.s32 %s94, 1
    %p98 = scmp.eq.s32.totalorder %s13, 1
    %p99 = scmp.ne.s32.totalorder %s94, %s96
    %p100 = scmp.eq.s32.totalorder %s13, 0
    %p101 = por %p99, %p100
    %p102 = scmp.ne.s32.totalorder %s94, %s96
    %p103 = scmp.eq.s32.totalorder %s18, 1
    %p104 = por %p102, %p103
    %p105 = scmp.ne.s32.totalorder %s96, %s97
    %p106 = scmp.eq.s32.totalorder %s18, 0
    %p107 = por %p105, %p106
    %p108 = scmp.ne.s32.totalorder %s96, %s97
    %p109 = scmp.eq.s32.totalorder %s19, 1
    %p110 = por %p108, %p109
    %p112 = scmp.ne.s32.totalorder %s97, %s111
    %p113 = scmp.eq.s32.totalorder %s19, 0
    %p114 = por %p112, %p113
    %s116 = sadd.s32 %s115, 1
    %p119 = scmp.eq.s32.totalorder %s13, 1
    %p120 = scmp.ne.s32.totalorder %s115, %s117
    %p121 = scmp.eq.s32.totalorder %s13, 0
    %p122 = por %p120, %p121
    %p123 = scmp.ne.s32.totalorder %s115, %s117
    %p124 = scmp.eq.s32.totalorder %s18, 1
    %p125 = por %p123, %p124
    %p126 = scmp.ne.s32.totalorder %s117, %s118
    %p127 = scmp.eq.s32.totalorder %s18, 0
    %p128 = por %p126, %p127
    %p129 = scmp.ne.s32.totalorder %s117, %s118
    %p130 = scmp.eq.s32.totalorder %s19, 1
    %p131 = por %p129, %p130
    %p133 = scmp.ne.s32.totalorder %s118, %s132
    %p134 = scmp.eq.s32.totalorder %s19, 0
    %p135 = por %p133, %p134
    %s137 = sadd.s32 %s136, 1
    %p140 = scmp.eq.s32.totalorder %s13, 1
    %p141 = scmp.ne.s32.totalorder %s136, %s138
    %p142 = scmp.eq.s32.totalorder %s13, 0
    %p143 = por %p141, %p142
    %p144 = scmp.ne.s32.totalorder %s136, %s138
    %p145 = scmp.eq.s32.totalorder %s18, 1
    %p146 = por %p144, %p145
    %p147 = scmp.ne.s32.totalorder %s138, %s139
    %p148 = scmp.eq.s32.totalorder %s18, 0
    %p149 = por %p147, %p148
    %p150 = scmp.ne.s32.totalorder %s138, %s139
    %p151 = scmp.eq.s32.totalorder %s19, 1
    %p152 = por %p150, %p151
    %p154 = scmp.ne.s32.totalorder %s139, %s153
    %p155 = scmp.eq.s32.totalorder %s19, 0
    %p156 = por %p154, %p155
    %s157 = ssub.s32 %s13, %s20
    %p158 = scmp.eq.s32.totalorder %s157, 0
    %s160 = sadd.s32 %s159, 1
    %s161 = scalar_select %p158, %s159, %s160
    %p164 = pneg %p158
    %p165 = scmp.eq.s32.totalorder %s13, 1
    %p166 = por %p164, %p165
    %p167 = scmp.ne.s32.totalorder %s159, %s162
    %p168 = scmp.eq.s32.totalorder %s13, 0
    %p169 = por %p167, %p168
    %p170 = scmp.ne.s32.totalorder %s159, %s162
    %p171 = scmp.eq.s32.totalorder %s18, 1
    %p172 = por %p170, %p171
    %p173 = scmp.ne.s32.totalorder %s162, %s163
    %p174 = scmp.eq.s32.totalorder %s18, 0
    %p175 = por %p173, %p174
    %p176 = scmp.ne.s32.totalorder %s162, %s163
    %p177 = scmp.eq.s32.totalorder %s19, 1
    %p178 = por %p176, %p177
    %p180 = scmp.ne.s32.totalorder %s163, %s179
    %p181 = scmp.eq.s32.totalorder %s19, 0
    %p182 = por %p180, %p181
    %p183 = scmp.le.s32.totalorder 1, %s13
    %p184 = scmp.lt.s32.totalorder %s13, 3
    %p185 = pnand %p183, %p184
    %p186 = pneg %p185
    // Predicated region
    $region9: #{forward.1} parent=5 // pred_check
      _
    $region10: #{forward.1} parent=5 // pred_check_branch
      %188 = sbr.rel (%p185) target = $region12
    $region11: #{forward.1} parent=5 // pred_region
      %s189 = ssub.s32 %s13, 1
      // Predicated region
      $region13: #{forward.1} parent=11 // pred_check
        %p190 = pneg %p86
      $region14: #{forward.1} parent=11 // pred_check_branch
        %192 = sbr.rel (%p190) target = $region16
      $region15: #{forward.1} parent=11 // pred_region
        _
      $region16: #{forward.1} parent=11 // pred_fallthru
        _
      // Predicated region
      $region17: #{forward.1} parent=11 // pred_check
        %p193 = pneg %p107
      $region18: #{forward.1} parent=11 // pred_check_branch
        %195 = sbr.rel (%p193) target = $region20
      $region19: #{forward.1} parent=11 // pred_region
        _
      $region20: #{forward.1} parent=11 // pred_fallthru
        _
      // Predicated region
      $region21: #{forward.1} parent=11 // pred_check
        %p196 = pneg %p128
      $region22: #{forward.1} parent=11 // pred_check_branch
        %198 = sbr.rel (%p196) target = $region24
      $region23: #{forward.1} parent=11 // pred_region
        _
      $region24: #{forward.1} parent=11 // pred_fallthru
        _
      // Predicated region
      $region25: #{forward.1} parent=11 // pred_check
        %p199 = pneg %p149
      $region26: #{forward.1} parent=11 // pred_check_branch
        %201 = sbr.rel (%p199) target = $region28
      $region27: #{forward.1} parent=11 // pred_region
        _
      $region28: #{forward.1} parent=11 // pred_fallthru
        _
    $region12: #{forward.1} parent=5 // pred_fallthru
      _
    %p202 = scmp.lt.s32.totalorder %s13, 2
    // Predicated region
    $region29: #{forward.1} parent=5 // pred_check
      %p203 = pneg %p202
    $region30: #{forward.1} parent=5 // pred_check_branch
      %205 = sbr.rel (%p203) target = $region32
    $region31: #{forward.1} parent=5 // pred_region
      // Predicated region
      $region33: #{forward.1} parent=31 // pred_check
        %p206 = pneg %p33
      $region34: #{forward.1} parent=31 // pred_check_branch
        %208 = sbr.rel (%p206) target = $region36
      $region35: #{forward.1} parent=31 // pred_region
        %p209 = scmp.lt.s32.totalorder %s13, 1
        %s210 = scalar_select %p209, %s13, 1
        %s211 = smul.addr %s210, 3
        %s212 = smul.addr %s211, 2
        %s213 = scalar_lea.vmem %s0, %s212
      $region36: #{forward.1} parent=31 // pred_fallthru
        _
      // Predicated region
      $region37: #{forward.1} parent=31 // pred_check
        %p214 = pneg %p59
      $region38: #{forward.1} parent=31 // pred_check_branch
        %216 = sbr.rel (%p214) target = $region40
      $region39: #{forward.1} parent=31 // pred_region
        %p217 = scmp.lt.s32.totalorder %s13, 1
        %s218 = scalar_select %p217, %s13, 1
        %s219 = smul.addr %s218, 4
        %s220 = scalar_lea.vmem %s1, %s219
      $region40: #{forward.1} parent=31 // pred_fallthru
        _
    $region32: #{forward.1} parent=5 // pred_fallthru
      _
    %p221 = scmp.le.s32.totalorder 1, %s13
    %p222 = scmp.lt.s32.totalorder %s13, 3
    %p223 = pnand %p221, %p222
    %p224 = pneg %p223
    // Predicated region
    $region41: #{forward.1} parent=5 // pred_check
      _
    $region42: #{forward.1} parent=5 // pred_check_branch
      %226 = sbr.rel (%p223) target = $region44
    $region43: #{forward.1} parent=5 // pred_region
      %s227 = ssub.s32 %s13, 1
      %p228 = scmp.lt.s32.totalorder %s18, 1
      %s229 = scalar_select %p228, %s18, 1
      %s230 = smul.addr %s229, 3
      %s231 = smul.addr %s230, 2
      %s232 = scalar_lea.vmem %s0, %s231
      %p233 = pneg %p39
      %p234 = pneg %p36
      %p235 = scmp.lt.s32.totalorder %s18, 1
      %s236 = scalar_select %p235, %s18, 1
      %s237 = smul.addr %s236, 4
      %s238 = scalar_lea.vmem %s1, %s237
      %p239 = pneg %p65
      %p240 = pneg %p62
      %p241 = pneg %p86
      %p242 = pneg %p83
      %p243 = pneg %p107
      %p244 = pneg %p104
      %p245 = pneg %p128
      %p246 = pneg %p125
      %p247 = pneg %p149
      %p248 = pneg %p146
      %p249 = pneg %p175
      %p250 = pneg %p172
      %p251 = scmp.lt.s32.totalorder %s18, 1
      %s252 = scalar_select %p251, %s18, 1
      %s253 = smul.addr %s252, 3
      %s254 = scalar_lea.vmem %s6, %s253
      %p255 = scmp.lt.s32.totalorder %s18, 1
      %s256 = scalar_select %p255, %s18, 1
      %s257 = smul.addr %s256, 3
      %s258 = smul.addr %s257, 2
      %s259 = scalar_lea.vmem %s0, %s258
      %p260 = scmp.lt.s32.totalorder %s18, 1
      %s261 = scalar_select %p260, %s18, 1
      %s262 = smul.addr %s261, 4
      %s263 = scalar_lea.vmem %s1, %s262
      %p264 = scmp.lt.s32.totalorder %s18, 1
      %s265 = scalar_select %p264, %s18, 1
      %s266 = smul.addr %s265, 3
      %s267 = scalar_lea.vmem %s6, %s266
      %s268 = sld [smem:[#allocation2]]
      %v269 = vld [vmem:[%s259] sm:$0x3f]
      %v270 = vunpack.c.l.bf16 %v269
      %v271 = vunpack.c.h.bf16 %v269
      %v272 = vld [vmem:[%s2] sm:$0xff]
      %v273 = vld [vmem:[%s2 + $0x8] sm:$0x1]
      %v276 = vcombine.high %v270, %v270
      %vm277 = vcmask 31744
      %v279 = vsel %vm277, %v272, 0
      %v282 = vsel %vm277, %v273, 0
      %vm284 = vcmask 1043456
      %v285 = vsel %vm284, %v270, 0
      %v287 = vsel %vm284, %v276, 0
      %v289 = vsel %vm284, %v271, 0
      %291 = vmatprep.subr.mxu0 %v287
      %292 = vmatpush1.msra.mxu0 %v285
      %293 = vmatprep.subr.mxu0 0.0
      %294 = vmatpush1.msra.mxu0 0.0
      %295 = vmatprep.subr.mxu0 0.0
      %296 = vmatpush1.msra.mxu0 0.0
      %297 = vmatprep.subr.mxu0 0.0
      %298 = vmatpush1.msra.mxu0 0.0
      %299 = vmatprep.subr.mxu0 0.0
      %300 = vmatpush1.msra.mxu0 0.0
      %301 = vmatprep.subr.mxu0 0.0
      %302 = vmatpush1.msra.mxu0 0.0
      %303 = vmatprep.subr.mxu0 0.0
      %304 = vmatpush1.msra.mxu0 0.0
      %305 = vmatprep.subr.mxu0 0.0
      %306 = vmatpush1.msra.mxu0 0.0
      %307 = vmatprep.subr.mxu0 0.0
      %308 = vmatpush1.msra.mxu0 0.0
      %309 = vmatprep.subr.mxu0 0.0
      %310 = vmatpush1.msra.mxu0 0.0
      %311 = vmatprep.subr.mxu0 0.0
      %312 = vmatpush1.msra.mxu0 0.0
      %313 = vmatprep.subr.mxu0 0.0
      %314 = vmatpush1.msra.mxu0 0.0
      %315 = vmatprep.subr.mxu0 0.0
      %316 = vmatpush1.msra.mxu0 0.0
      %317 = vmatprep.subr.mxu0 0.0
      %318 = vmatpush1.msra.mxu0 0.0
      %319 = vmatprep.subr.mxu0 0.0
      %320 = vmatpush1.msra.mxu0 0.0
      %321 = vmatprep.subr.mxu0 0.0
      %322 = vmatpush1.msra.mxu0 0.0
      %323 = vmatprep.subr.mxu0 0.0
      %324 = vmatpush1.msra.mxu0 0.0
      %325 = vmatprep.subr.mxu0 0.0
      %326 = vmatpush1.msra.mxu0 0.0
      %327 = vmatprep.subr.mxu0 0.0
      %328 = vmatpush1.msra.mxu0 0.0
      %329 = vmatprep.subr.mxu0 0.0
      %330 = vmatpush1.msra.mxu0 0.0
      %331 = vmatprep.subr.mxu0 0.0
      %332 = vmatpush1.msra.mxu0 0.0
      %333 = vmatprep.subr.mxu0 0.0
      %334 = vmatpush1.msra.mxu0 0.0
      %335 = vmatprep.subr.mxu0 0.0
      %336 = vmatpush1.msra.mxu0 0.0
      %337 = vmatprep.subr.mxu0 0.0
      %338 = vmatpush1.msra.mxu0 0.0
      %339 = vmatprep.subr.mxu0 0.0
      %340 = vmatpush1.msra.mxu0 0.0
      %341 = vmatprep.subr.mxu0 0.0
      %342 = vmatpush1.msra.mxu0 0.0
      %343 = vmatprep.subr.mxu0 0.0
      %344 = vmatpush1.msra.mxu0 0.0
      %345 = vmatprep.subr.mxu0 0.0
      %346 = vmatpush1.msra.mxu0 0.0
      %347 = vmatprep.subr.mxu0 0.0
      %348 = vmatpush1.msra.mxu0 0.0
      %349 = vmatprep.subr.mxu0 0.0
      %350 = vmatpush1.msra.mxu0 0.0
      %351 = vmatprep.subr.mxu0 0.0
      %352 = vmatpush1.msra.mxu0 0.0
      %353 = vmatprep.subr.mxu0 0.0
      %354 = vmatpush1.msra.mxu0 0.0
      %355 = vmatprep.mubr.f32.mxu0 0.0
      %356 = vmatmul.mubr.f32.gmra.mrb[0].mxu0 %v279
      %v357 = vpop.f32.mrb[0].mxu0
      %v358 = vadd.f32 0.0, %v357
      %v359 = vpop.f32.mrb[0].mxu0
      %v360 = vadd.f32 0.0, %v359
      %361 = vmatprep.mubr.f32.mxu0 0.0
      %362 = vmatmul.mubr.f32.gmra.mrb[0].mxu0 %v282
      %v363 = vpop.f32.mrb[0].mxu0
      %v364 = vadd.f32 0.0, %v363
      %v365 = vpop.f32.mrb[0].mxu0
      %v366 = vadd.f32 0.0, %v365
      %367 = vdwg.mxu0
      %368 = vmatprep.subr.mxu0 0.0
      %369 = vmatpush1.msra.mxu0 %v289
      %370 = vmatprep.subr.mxu0 0.0
      %371 = vmatpush1.msra.mxu0 0.0
      %372 = vmatprep.subr.mxu0 0.0
      %373 = vmatpush1.msra.mxu0 0.0
      %374 = vmatprep.subr.mxu0 0.0
      %375 = vmatpush1.msra.mxu0 0.0
      %376 = vmatprep.subr.mxu0 0.0
      %377 = vmatpush1.msra.mxu0 0.0
      %378 = vmatprep.subr.mxu0 0.0
      %379 = vmatpush1.msra.mxu0 0.0
      %380 = vmatprep.subr.mxu0 0.0
      %381 = vmatpush1.msra.mxu0 0.0
      %382 = vmatprep.subr.mxu0 0.0
      %383 = vmatpush1.msra.mxu0 0.0
      %384 = vmatprep.subr.mxu0 0.0
      %385 = vmatpush1.msra.mxu0 0.0
      %386 = vmatprep.subr.mxu0 0.0
      %387 = vmatpush1.msra.mxu0 0.0
      %388 = vmatprep.subr.mxu0 0.0
      %389 = vmatpush1.msra.mxu0 0.0
      %390 = vmatprep.subr.mxu0 0.0
      %391 = vmatpush1.msra.mxu0 0.0
      %392 = vmatprep.subr.mxu0 0.0
      %393 = vmatpush1.msra.mxu0 0.0
      %394 = vmatprep.subr.mxu0 0.0
      %395 = vmatpush1.msra.mxu0 0.0
      %396 = vmatprep.subr.mxu0 0.0
      %397 = vmatpush1.msra.mxu0 0.0
      %398 = vmatprep.subr.mxu0 0.0
      %399 = vmatpush1.msra.mxu0 0.0
      %400 = vmatprep.subr.mxu0 0.0
      %401 = vmatpush1.msra.mxu0 0.0
      %402 = vmatprep.subr.mxu0 0.0
      %403 = vmatpush1.msra.mxu0 0.0
      %404 = vmatprep.subr.mxu0 0.0
      %405 = vmatpush1.msra.mxu0 0.0
      %406 = vmatprep.subr.mxu0 0.0
      %407 = vmatpush1.msra.mxu0 0.0
      %408 = vmatprep.subr.mxu0 0.0
      %409 = vmatpush1.msra.mxu0 0.0
      %410 = vmatprep.subr.mxu0 0.0
      %411 = vmatpush1.msra.mxu0 0.0
      %412 = vmatprep.subr.mxu0 0.0
      %413 = vmatpush1.msra.mxu0 0.0
      %414 = vmatprep.subr.mxu0 0.0
      %415 = vmatpush1.msra.mxu0 0.0
      %416 = vmatprep.subr.mxu0 0.0
      %417 = vmatpush1.msra.mxu0 0.0
      %418 = vmatprep.subr.mxu0 0.0
      %419 = vmatpush1.msra.mxu0 0.0
      %420 = vmatprep.subr.mxu0 0.0
      %421 = vmatpush1.msra.mxu0 0.0
      %422 = vmatprep.subr.mxu0 0.0
      %423 = vmatpush1.msra.mxu0 0.0
      %424 = vmatprep.subr.mxu0 0.0
      %425 = vmatpush1.msra.mxu0 0.0
      %426 = vmatprep.subr.mxu0 0.0
      %427 = vmatpush1.msra.mxu0 0.0
      %428 = vmatprep.subr.mxu0 0.0
      %429 = vmatpush1.msra.mxu0 0.0
      %430 = vmatprep.subr.mxu0 0.0
      %431 = vmatpush1.msra.mxu0 0.0
      %432 = vmatprep.mubr.f32.mxu0 0.0
      %433 = vmatmul.mubr.f32.gmra.mrb[0].mxu0 %v279
      %v434 = vpop.f32.mrb[0].mxu0
      %v435 = vadd.f32 0.0, %v434
      %v436 = vpop.f32.mrb[0].mxu0
      %437 = vmatprep.mubr.f32.mxu0 0.0
      %438 = vmatmul.mubr.f32.gmra.mrb[0].mxu0 %v282
      %v439 = vpop.f32.mrb[0].mxu0
      %v440 = vadd.f32 0.0, %v439
      %v441 = vpop.f32.mrb[0].mxu0
      %442 = vdwg.mxu0
      %v446 = vrot.slane %v358, 1
      %v447 = vrot.slane %v360, 1
      %v448 = vrot.slane %v435, 1
      %449 = vrot.lane.b32.xlu0 %v446, 127
      %v450 = vpop.permute.xlu0 %449
      %451 = vrot.lane.b32.xlu0 %v447, 127
      %v452 = vpop.permute.xlu0 %451
      %453 = vrot.lane.b32.xlu0 %v448, 127
      %v454 = vpop.permute.xlu0 %453
      %vm455 = vcmask 1039360
      %v456 = vsel %vm455, %v450, %v452
      %v457 = vsel %vm455, %v452, %v454
      %v461 = vadd.f32 %v358, %v456
      %v462 = vadd.f32 %v360, %v457
      %v463 = vadd.f32 %v435, %v454
      %v464 = vrot.slane %v358, 2
      %v465 = vrot.slane %v360, 2
      %v466 = vrot.slane %v435, 2
      %467 = vrot.lane.b32.xlu0 %v464, 126
      %v468 = vpop.permute.xlu0 %467
      %469 = vrot.lane.b32.xlu0 %v465, 126
      %v470 = vpop.permute.xlu0 %469
      %471 = vrot.lane.b32.xlu0 %v466, 126
      %v472 = vpop.permute.xlu0 %471
      %vm473 = vcmask 1031168
      %v474 = vsel %vm473, %v468, %v470
      %v475 = vsel %vm473, %v470, %v472
      %v479 = vadd.f32 %v461, %v474
      %v480 = vadd.f32 %v462, %v475
      %v481 = vadd.f32 %v463, %v472
      %v482 = vrot.slane %v358, 3
      %v483 = vrot.slane %v360, 3
      %v484 = vrot.slane %v435, 3
      %485 = vrot.lane.b32.xlu0 %v482, 110
      %v486 = vpop.permute.xlu0 %485
      %487 = vrot.lane.b32.xlu0 %v483, 110
      %v488 = vpop.permute.xlu0 %487
      %489 = vrot.lane.b32.xlu0 %v484, 110
      %v490 = vpop.permute.xlu0 %489
      %vm491 = vcmask 900096
      %v492 = vsel %vm491, %v486, %v488
      %v493 = vsel %vm491, %v488, %v490
      %v497 = vadd.f32 %v479, %v492
      %v498 = vadd.f32 %v480, %v493
      %v499 = vadd.f32 %v481, %v490
      %v500 = vrot.slane %v358, 4
      %v501 = vrot.slane %v360, 4
      %v502 = vrot.slane %v435, 4
      %503 = vrot.lane.b32.xlu0 %v500, 109
      %v504 = vpop.permute.xlu0 %503
      %505 = vrot.lane.b32.xlu0 %v501, 109
      %v506 = vpop.permute.xlu0 %505
      %507 = vrot.lane.b32.xlu0 %v502, 109
      %v508 = vpop.permute.xlu0 %507
      %vm509 = vcmask 891904
      %v510 = vsel %vm509, %v504, %v506
      %v511 = vsel %vm509, %v506, %v508
      %v515 = vadd.f32 %v497, %v510
      %v516 = vadd.f32 %v498, %v511
      %v517 = vadd.f32 %v499, %v508
      %v518 = vrot.slane %v358, 5
      %v519 = vrot.slane %v360, 5
      %v520 = vrot.slane %v435, 5
      %521 = vrot.lane.b32.xlu0 %v518, 108
      %v522 = vpop.permute.xlu0 %521
      %523 = vrot.lane.b32.xlu0 %v519, 108
      %v524 = vpop.permute.xlu0 %523
      %525 = vrot.lane.b32.xlu0 %v520, 108
      %v526 = vpop.permute.xlu0 %525
      %vm527 = vcmask 883712
      %v528 = vsel %vm527, %v522, %v524
      %v529 = vsel %vm527, %v524, %v526
      %v533 = vadd.f32 %v515, %v528
      %v534 = vadd.f32 %v516, %v529
      %v535 = vadd.f32 %v517, %v526
      %v536 = vrot.slane %v358, 6
      %v537 = vrot.slane %v360, 6
      %v538 = vrot.slane %v435, 6
      %539 = vrot.lane.b32.xlu0 %v536, 92
      %v540 = vpop.permute.xlu0 %539
      %541 = vrot.lane.b32.xlu0 %v537, 92
      %v542 = vpop.permute.xlu0 %541
      %543 = vrot.lane.b32.xlu0 %v538, 92
      %v544 = vpop.permute.xlu0 %543
      %vm545 = vcmask 752640
      %v546 = vsel %vm545, %v540, %v542
      %v547 = vsel %vm545, %v542, %v544
      %v551 = vadd.f32 %v533, %v546
      %v552 = vadd.f32 %v534, %v547
      %v553 = vadd.f32 %v535, %v544
      %v554 = vrot.slane %v358, 7
      %v555 = vrot.slane %v360, 7
      %v556 = vrot.slane %v435, 7
      %557 = vrot.lane.b32.xlu0 %v554, 91
      %v558 = vpop.permute.xlu0 %557
      %559 = vrot.lane.b32.xlu0 %v555, 91
      %v560 = vpop.permute.xlu0 %559
      %561 = vrot.lane.b32.xlu0 %v556, 91
      %v562 = vpop.permute.xlu0 %561
      %vm563 = vcmask 744448
      %v564 = vsel %vm563, %v558, %v560
      %v565 = vsel %vm563, %v560, %v562
      %v569 = vadd.f32 %v551, %v564
      %v570 = vadd.f32 %v552, %v565
      %v571 = vadd.f32 %v553, %v562
      %575 = vrot.lane.b32.xlu0 %v364, 90
      %v576 = vpop.permute.xlu0 %575
      %577 = vrot.lane.b32.xlu0 %v366, 90
      %v578 = vpop.permute.xlu0 %577
      %579 = vrot.lane.b32.xlu0 %v440, 90
      %v580 = vpop.permute.xlu0 %579
      %vm581 = vcmask 736256
      %v582 = vsel %vm581, %v576, %v578
      %v583 = vsel %vm581, %v578, %v580
      %v587 = vadd.f32 %v569, %v582
      %v588 = vadd.f32 %v570, %v583
      %v589 = vadd.f32 %v571, %v580
      %v590 = vstv %s268
      %v591 = vadd.f32 %v587, %v590
      %v592 = vadd.f32 %v588, %v590
      %v593 = vadd.f32 %v589, %v590
      %v594 = vld [vmem:[%s263] sm:$0xf]
      %v595 = vunpack.c.l.bf16 %v594
      %v596 = vld [vmem:[%s3] sm:$0xff]
      %v597 = vld [vmem:[%s3 + $0x8] sm:$0xff]
      %v598 = vld [vmem:[%s3 + $0x10] sm:$0xff]
      %v599 = vld [vmem:[%s3 + $0x18] sm:$0xff]
      %vm600 = vcmask 261120
      %v602 = vsel %vm600, %v595, 0
      %604 = vmatprep.subr.mxu0 0.0
      %605 = vmatpush1.msra.mxu0 %v596
      %606 = vmatprep.subr.mxu0 0.0
      %607 = vmatpush1.msra.mxu0 %v597
      %608 = vmatprep.subr.mxu0 0.0
      %609 = vmatpush1.msra.mxu0 %v598
      %610 = vmatprep.subr.mxu0 0.0
      %611 = vmatpush1.msra.mxu0 %v599
      %612 = vmatprep.subr.mxu0 0.0
      %613 = vmatpush1.msra.mxu0 0.0
      %614 = vmatprep.subr.mxu0 0.0
      %615 = vmatpush1.msra.mxu0 0.0
      %616 = vmatprep.subr.mxu0 0.0
      %617 = vmatpush1.msra.mxu0 0.0
      %618 = vmatprep.subr.mxu0 0.0
      %619 = vmatpush1.msra.mxu0 0.0
      %620 = vmatprep.subr.mxu0 0.0
      %621 = vmatpush1.msra.mxu0 0.0
      %622 = vmatprep.subr.mxu0 0.0
      %623 = vmatpush1.msra.mxu0 0.0
      %624 = vmatprep.subr.mxu0 0.0
      %625 = vmatpush1.msra.mxu0 0.0
      %626 = vmatprep.subr.mxu0 0.0
      %627 = vmatpush1.msra.mxu0 0.0
      %628 = vmatprep.subr.mxu0 0.0
      %629 = vmatpush1.msra.mxu0 0.0
      %630 = vmatprep.subr.mxu0 0.0
      %631 = vmatpush1.msra.mxu0 0.0
      %632 = vmatprep.subr.mxu0 0.0
      %633 = vmatpush1.msra.mxu0 0.0
      %634 = vmatprep.subr.mxu0 0.0
      %635 = vmatpush1.msra.mxu0 0.0
      %636 = vmatprep.subr.mxu0 0.0
      %637 = vmatpush1.msra.mxu0 0.0
      %638 = vmatprep.subr.mxu0 0.0
      %639 = vmatpush1.msra.mxu0 0.0
      %640 = vmatprep.subr.mxu0 0.0
      %641 = vmatpush1.msra.mxu0 0.0
      %642 = vmatprep.subr.mxu0 0.0
      %643 = vmatpush1.msra.mxu0 0.0
      %644 = vmatprep.subr.mxu0 0.0
      %645 = vmatpush1.msra.mxu0 0.0
      %646 = vmatprep.subr.mxu0 0.0
      %647 = vmatpush1.msra.mxu0 0.0
      %648 = vmatprep.subr.mxu0 0.0
      %649 = vmatpush1.msra.mxu0 0.0
      %650 = vmatprep.subr.mxu0 0.0
      %651 = vmatpush1.msra.mxu0 0.0
      %652 = vmatprep.subr.mxu0 0.0
      %653 = vmatpush1.msra.mxu0 0.0
      %654 = vmatprep.subr.mxu0 0.0
      %655 = vmatpush1.msra.mxu0 0.0
      %656 = vmatprep.subr.mxu0 0.0
      %657 = vmatpush1.msra.mxu0 0.0
      %658 = vmatprep.subr.mxu0 0.0
      %659 = vmatpush1.msra.mxu0 0.0
      %660 = vmatprep.subr.mxu0 0.0
      %661 = vmatpush1.msra.mxu0 0.0
      %662 = vmatprep.subr.mxu0 0.0
      %663 = vmatpush1.msra.mxu0 0.0
      %664 = vmatprep.subr.mxu0 0.0
      %665 = vmatpush1.msra.mxu0 0.0
      %666 = vmatprep.subr.mxu0 0.0
      %667 = vmatpush1.msra.mxu0 0.0
      %668 = vmatprep.mubr.f32.mxu0 0.0
      %669 = vmatmul.mubr.f32.gmra.mrb[0].mxu0 %v602
      %v670 = vpop.f32.mrb[0].mxu0
      %v671 = vadd.f32 0.0, %v670
      %v672 = vpop.f32.mrb[0].mxu0
      %673 = vdwg.mxu0
      %v674 = vld [vmem:[%s4] sm:$0xff]
      %v675 = vld [vmem:[%s4 + $0x8] sm:$0xff]
      %s676 = scalar_lea.vmem %s3, 32
      %v677 = vld [vmem:[%s676] sm:$0xff]
      %v678 = vld [vmem:[%s676 + $0x8] sm:$0xff]
      %v679 = vld [vmem:[%s676 + $0x10] sm:$0xff]
      %v680 = vld [vmem:[%s676 + $0x18] sm:$0xff]
      %681 = vmatprep.subr.mxu0 0.0
      %682 = vmatpush1.msra.mxu0 %v677
      %683 = vmatprep.subr.mxu0 0.0
      %684 = vmatpush1.msra.mxu0 %v678
      %685 = vmatprep.subr.mxu0 0.0
      %686 = vmatpush1.msra.mxu0 %v679
      %687 = vmatprep.subr.mxu0 0.0
      %688 = vmatpush1.msra.mxu0 %v680
      %689 = vmatprep.subr.mxu0 0.0
      %690 = vmatpush1.msra.mxu0 0.0
      %691 = vmatprep.subr.mxu0 0.0
      %692 = vmatpush1.msra.mxu0 0.0
      %693 = vmatprep.subr.mxu0 0.0
      %694 = vmatpush1.msra.mxu0 0.0
      %695 = vmatprep.subr.mxu0 0.0
      %696 = vmatpush1.msra.mxu0 0.0
      %697 = vmatprep.subr.mxu0 0.0
      %698 = vmatpush1.msra.mxu0 0.0
      %699 = vmatprep.subr.mxu0 0.0
      %700 = vmatpush1.msra.mxu0 0.0
      %701 = vmatprep.subr.mxu0 0.0
      %702 = vmatpush1.msra.mxu0 0.0
      %703 = vmatprep.subr.mxu0 0.0
      %704 = vmatpush1.msra.mxu0 0.0
      %705 = vmatprep.subr.mxu0 0.0
      %706 = vmatpush1.msra.mxu0 0.0
      %707 = vmatprep.subr.mxu0 0.0
      %708 = vmatpush1.msra.mxu0 0.0
      %709 = vmatprep.subr.mxu0 0.0
      %710 = vmatpush1.msra.mxu0 0.0
      %711 = vmatprep.subr.mxu0 0.0
      %712 = vmatpush1.msra.mxu0 0.0
      %713 = vmatprep.subr.mxu0 0.0
      %714 = vmatpush1.msra.mxu0 0.0
      %715 = vmatprep.subr.mxu0 0.0
      %716 = vmatpush1.msra.mxu0 0.0
      %717 = vmatprep.subr.mxu0 0.0
      %718 = vmatpush1.msra.mxu0 0.0
      %719 = vmatprep.subr.mxu0 0.0
      %720 = vmatpush1.msra.mxu0 0.0
      %721 = vmatprep.subr.mxu0 0.0
      %722 = vmatpush1.msra.mxu0 0.0
      %723 = vmatprep.subr.mxu0 0.0
      %724 = vmatpush1.msra.mxu0 0.0
      %725 = vmatprep.subr.mxu0 0.0
      %726 = vmatpush1.msra.mxu0 0.0
      %727 = vmatprep.subr.mxu0 0.0
      %728 = vmatpush1.msra.mxu0 0.0
      %729 = vmatprep.subr.mxu0 0.0
      %730 = vmatpush1.msra.mxu0 0.0
      %731 = vmatprep.subr.mxu0 0.0
      %732 = vmatpush1.msra.mxu0 0.0
      %733 = vmatprep.subr.mxu0 0.0
      %734 = vmatpush1.msra.mxu0 0.0
      %735 = vmatprep.subr.mxu0 0.0
      %736 = vmatpush1.msra.mxu0 0.0
      %737 = vmatprep.subr.mxu0 0.0
      %738 = vmatpush1.msra.mxu0 0.0
      %739 = vmatprep.subr.mxu0 0.0
      %740 = vmatpush1.msra.mxu0 0.0
      %741 = vmatprep.subr.mxu0 0.0
      %742 = vmatpush1.msra.mxu0 0.0
      %743 = vmatprep.subr.mxu0 0.0
      %744 = vmatpush1.msra.mxu0 0.0
      %745 = vmatprep.mubr.f32.mxu0 0.0
      %746 = vmatmul.mubr.f32.gmra.mrb[0].mxu0 %v602
      %v747 = vpop.f32.mrb[0].mxu0
      %v748 = vadd.f32 0.0, %v747
      %v749 = vpop.f32.mrb[0].mxu0
      %750 = vdwg.mxu0
      %s751 = scalar_lea.vmem %s4, 16
      %v752 = vld [vmem:[%s751] sm:$0xff]
      %v753 = vld [vmem:[%s751 + $0x8] sm:$0xff]
      %vm754 = vcmask 64512
      %v756 = vsel %vm754, %v752, 0
      %v759 = vsel %vm754, %v753, 0
      %761 = vmatprep.subr.mxu0 0.0
      %762 = vmatpush1.msra.mxu0 %v748
      %763 = vmatprep.subr.mxu0 0.0
      %764 = vmatpush1.msra.mxu0 0.0
      %765 = vmatprep.subr.mxu0 0.0
      %766 = vmatpush1.msra.mxu0 0.0
      %767 = vmatprep.subr.mxu0 0.0
      %768 = vmatpush1.msra.mxu0 0.0
      %769 = vmatprep.subr.mxu0 0.0
      %770 = vmatpush1.msra.mxu0 0.0
      %771 = vmatprep.subr.mxu0 0.0
      %772 = vmatpush1.msra.mxu0 0.0
      %773 = vmatprep.subr.mxu0 0.0
      %774 = vmatpush1.msra.mxu0 0.0
      %775 = vmatprep.subr.mxu0 0.0
      %776 = vmatpush1.msra.mxu0 0.0
      %777 = vmatprep.subr.mxu0 0.0
      %778 = vmatpush1.msra.mxu0 0.0
      %779 = vmatprep.subr.mxu0 0.0
      %780 = vmatpush1.msra.mxu0 0.0
      %781 = vmatprep.subr.mxu0 0.0
      %782 = vmatpush1.msra.mxu0 0.0
      %783 = vmatprep.subr.mxu0 0.0
      %784 = vmatpush1.msra.mxu0 0.0
      %785 = vmatprep.subr.mxu0 0.0
      %786 = vmatpush1.msra.mxu0 0.0
      %787 = vmatprep.subr.mxu0 0.0
      %788 = vmatpush1.msra.mxu0 0.0
      %789 = vmatprep.subr.mxu0 0.0
      %790 = vmatpush1.msra.mxu0 0.0
      %791 = vmatprep.subr.mxu0 0.0
      %792 = vmatpush1.msra.mxu0 0.0
      %793 = vmatprep.subr.mxu0 0.0
      %794 = vmatpush1.msra.mxu0 0.0
      %795 = vmatprep.subr.mxu0 0.0
      %796 = vmatpush1.msra.mxu0 0.0
      %797 = vmatprep.subr.mxu0 0.0
      %798 = vmatpush1.msra.mxu0 0.0
      %799 = vmatprep.subr.mxu0 0.0
      %800 = vmatpush1.msra.mxu0 0.0
      %801 = vmatprep.subr.mxu0 0.0
      %802 = vmatpush1.msra.mxu0 0.0
      %803 = vmatprep.subr.mxu0 0.0
      %804 = vmatpush1.msra.mxu0 0.0
      %805 = vmatprep.subr.mxu0 0.0
      %806 = vmatpush1.msra.mxu0 0.0
      %807 = vmatprep.subr.mxu0 0.0
      %808 = vmatpush1.msra.mxu0 0.0
      %809 = vmatprep.subr.mxu0 0.0
      %810 = vmatpush1.msra.mxu0 0.0
      %811 = vmatprep.subr.mxu0 0.0
      %812 = vmatpush1.msra.mxu0 0.0
      %813 = vmatprep.subr.mxu0 0.0
      %814 = vmatpush1.msra.mxu0 0.0
      %815 = vmatprep.subr.mxu0 0.0
      %816 = vmatpush1.msra.mxu0 0.0
      %817 = vmatprep.subr.mxu0 0.0
      %818 = vmatpush1.msra.mxu0 0.0
      %819 = vmatprep.subr.mxu0 0.0
      %820 = vmatpush1.msra.mxu0 0.0
      %821 = vmatprep.subr.mxu0 0.0
      %822 = vmatpush1.msra.mxu0 0.0
      %823 = vmatprep.subr.mxu0 0.0
      %824 = vmatpush1.msra.mxu0 0.0
      %825 = vmatprep.mubr.f32.mxu0 0.0
      %826 = vmatmul.mubr.f32.gmra.mrb[0].mxu0 %v756
      %v827 = vpop.f32.mrb[0].mxu0
      %v828 = vadd.f32 0.0, %v827
      %v829 = vpop.f32.mrb[0].mxu0
      %830 = vmatprep.mubr.f32.mxu0 0.0
      %831 = vmatmul.mubr.f32.gmra.mrb[0].mxu0 %v759
      %v832 = vpop.f32.mrb[0].mxu0
      %v833 = vadd.f32 0.0, %v832
      %v834 = vpop.f32.mrb[0].mxu0
      %835 = vdwg.mxu0
      %v837 = vsel %vm754, %v674, 0
      %v840 = vsel %vm754, %v675, 0
      %842 = vmatprep.subr.mxu0 0.0
      %843 = vmatpush1.msra.mxu0 %v671
      %844 = vmatprep.subr.mxu0 0.0
      %845 = vmatpush1.msra.mxu0 0.0
      %846 = vmatprep.subr.mxu0 0.0
      %847 = vmatpush1.msra.mxu0 0.0
      %848 = vmatprep.subr.mxu0 0.0
      %849 = vmatpush1.msra.mxu0 0.0
      %850 = vmatprep.subr.mxu0 0.0
      %851 = vmatpush1.msra.mxu0 0.0
      %852 = vmatprep.subr.mxu0 0.0
      %853 = vmatpush1.msra.mxu0 0.0
      %854 = vmatprep.subr.mxu0 0.0
      %855 = vmatpush1.msra.mxu0 0.0
      %856 = vmatprep.subr.mxu0 0.0
      %857 = vmatpush1.msra.mxu0 0.0
      %858 = vmatprep.subr.mxu0 0.0
      %859 = vmatpush1.msra.mxu0 0.0
      %860 = vmatprep.subr.mxu0 0.0
      %861 = vmatpush1.msra.mxu0 0.0
      %862 = vmatprep.subr.mxu0 0.0
      %863 = vmatpush1.msra.mxu0 0.0
      %864 = vmatprep.subr.mxu0 0.0
      %865 = vmatpush1.msra.mxu0 0.0
      %866 = vmatprep.subr.mxu0 0.0
      %867 = vmatpush1.msra.mxu0 0.0
      %868 = vmatprep.subr.mxu0 0.0
      %869 = vmatpush1.msra.mxu0 0.0
      %870 = vmatprep.subr.mxu0 0.0
      %871 = vmatpush1.msra.mxu0 0.0
      %872 = vmatprep.subr.mxu0 0.0
      %873 = vmatpush1.msra.mxu0 0.0
      %874 = vmatprep.subr.mxu0 0.0
      %875 = vmatpush1.msra.mxu0 0.0
      %876 = vmatprep.subr.mxu0 0.0
      %877 = vmatpush1.msra.mxu0 0.0
      %878 = vmatprep.subr.mxu0 0.0
      %879 = vmatpush1.msra.mxu0 0.0
      %880 = vmatprep.subr.mxu0 0.0
      %881 = vmatpush1.msra.mxu0 0.0
      %882 = vmatprep.subr.mxu0 0.0
      %883 = vmatpush1.msra.mxu0 0.0
      %884 = vmatprep.subr.mxu0 0.0
      %885 = vmatpush1.msra.mxu0 0.0
      %886 = vmatprep.subr.mxu0 0.0
      %887 = vmatpush1.msra.mxu0 0.0
      %888 = vmatprep.subr.mxu0 0.0
      %889 = vmatpush1.msra.mxu0 0.0
      %890 = vmatprep.subr.mxu0 0.0
      %891 = vmatpush1.msra.mxu0 0.0
      %892 = vmatprep.subr.mxu0 0.0
      %893 = vmatpush1.msra.mxu0 0.0
      %894 = vmatprep.subr.mxu0 0.0
      %895 = vmatpush1.msra.mxu0 0.0
      %896 = vmatprep.subr.mxu0 0.0
      %897 = vmatpush1.msra.mxu0 0.0
      %898 = vmatprep.subr.mxu0 0.0
      %899 = vmatpush1.msra.mxu0 0.0
      %900 = vmatprep.subr.mxu0 0.0
      %901 = vmatpush1.msra.mxu0 0.0
      %902 = vmatprep.subr.mxu0 0.0
      %903 = vmatpush1.msra.mxu0 0.0
      %904 = vmatprep.subr.mxu0 0.0
      %905 = vmatpush1.msra.mxu0 0.0
      %906 = vmatprep.mubr.f32.mxu0 0.0
      %907 = vmatmul.mubr.f32.gmra.mrb[0].mxu0 %v837
      %v908 = vpop.f32.mrb[0].mxu0
      %v909 = vadd.f32 %v828, %v908
      %v910 = vpop.f32.mrb[0].mxu0
      %911 = vmatprep.mubr.f32.mxu0 0.0
      %912 = vmatmul.mubr.f32.gmra.mrb[0].mxu0 %v840
      %v913 = vpop.f32.mrb[0].mxu0
      %v914 = vadd.f32 %v833, %v913
      %v915 = vpop.f32.mrb[0].mxu0
      %916 = vdwg.mxu0
      %s917 = scalar_lea.vmem %s3, 64
      %v918 = vld [vmem:[%s917] sm:$0xff]
      %v919 = vld [vmem:[%s917 + $0x8] sm:$0xff]
      %v920 = vld [vmem:[%s917 + $0x10] sm:$0xff]
      %v921 = vld [vmem:[%s917 + $0x18] sm:$0xff]
      %922 = vmatprep.subr.mxu0 0.0
      %923 = vmatpush1.msra.mxu0 %v918
      %924 = vmatprep.subr.mxu0 0.0
      %925 = vmatpush1.msra.mxu0 %v919
      %926 = vmatprep.subr.mxu0 0.0
      %927 = vmatpush1.msra.mxu0 %v920
      %928 = vmatprep.subr.mxu0 0.0
      %929 = vmatpush1.msra.mxu0 %v921
      %930 = vmatprep.subr.mxu0 0.0
      %931 = vmatpush1.msra.mxu0 0.0
      %932 = vmatprep.subr.mxu0 0.0
      %933 = vmatpush1.msra.mxu0 0.0
      %934 = vmatprep.subr.mxu0 0.0
      %935 = vmatpush1.msra.mxu0 0.0
      %936 = vmatprep.subr.mxu0 0.0
      %937 = vmatpush1.msra.mxu0 0.0
      %938 = vmatprep.subr.mxu0 0.0
      %939 = vmatpush1.msra.mxu0 0.0
      %940 = vmatprep.subr.mxu0 0.0
      %941 = vmatpush1.msra.mxu0 0.0
      %942 = vmatprep.subr.mxu0 0.0
      %943 = vmatpush1.msra.mxu0 0.0
      %944 = vmatprep.subr.mxu0 0.0
      %945 = vmatpush1.msra.mxu0 0.0
      %946 = vmatprep.subr.mxu0 0.0
      %947 = vmatpush1.msra.mxu0 0.0
      %948 = vmatprep.subr.mxu0 0.0
      %949 = vmatpush1.msra.mxu0 0.0
      %950 = vmatprep.subr.mxu0 0.0
      %951 = vmatpush1.msra.mxu0 0.0
      %952 = vmatprep.subr.mxu0 0.0
      %953 = vmatpush1.msra.mxu0 0.0
      %954 = vmatprep.subr.mxu0 0.0
      %955 = vmatpush1.msra.mxu0 0.0
      %956 = vmatprep.subr.mxu0 0.0
      %957 = vmatpush1.msra.mxu0 0.0
      %958 = vmatprep.subr.mxu0 0.0
      %959 = vmatpush1.msra.mxu0 0.0
      %960 = vmatprep.subr.mxu0 0.0
      %961 = vmatpush1.msra.mxu0 0.0
      %962 = vmatprep.subr.mxu0 0.0
      %963 = vmatpush1.msra.mxu0 0.0
      %964 = vmatprep.subr.mxu0 0.0
      %965 = vmatpush1.msra.mxu0 0.0
      %966 = vmatprep.subr.mxu0 0.0
      %967 = vmatpush1.msra.mxu0 0.0
      %968 = vmatprep.subr.mxu0 0.0
      %969 = vmatpush1.msra.mxu0 0.0
      %970 = vmatprep.subr.mxu0 0.0
      %971 = vmatpush1.msra.mxu0 0.0
      %972 = vmatprep.subr.mxu0 0.0
      %973 = vmatpush1.msra.mxu0 0.0
      %974 = vmatprep.subr.mxu0 0.0
      %975 = vmatpush1.msra.mxu0 0.0
      %976 = vmatprep.subr.mxu0 0.0
      %977 = vmatpush1.msra.mxu0 0.0
      %978 = vmatprep.subr.mxu0 0.0
      %979 = vmatpush1.msra.mxu0 0.0
      %980 = vmatprep.subr.mxu0 0.0
      %981 = vmatpush1.msra.mxu0 0.0
      %982 = vmatprep.subr.mxu0 0.0
      %983 = vmatpush1.msra.mxu0 0.0
      %984 = vmatprep.subr.mxu0 0.0
      %985 = vmatpush1.msra.mxu0 0.0
      %986 = vmatprep.mubr.f32.mxu0 0.0
      %987 = vmatmul.mubr.f32.gmra.mrb[0].mxu0 %v602
      %v988 = vpop.f32.mrb[0].mxu0
      %v989 = vadd.f32 0.0, %v988
      %v990 = vpop.f32.mrb[0].mxu0
      %991 = vdwg.mxu0
      %s992 = scalar_lea.vmem %s4, 32
      %v993 = vld [vmem:[%s992] sm:$0xff]
      %v994 = vld [vmem:[%s992 + $0x8] sm:$0xff]
      %v996 = vsel %vm754, %v993, 0
      %v999 = vsel %vm754, %v994, 0
      %1001 = vmatprep.subr.mxu0 0.0
      %1002 = vmatpush1.msra.mxu0 %v989
      %1003 = vmatprep.subr.mxu0 0.0
      %1004 = vmatpush1.msra.mxu0 0.0
      %1005 = vmatprep.subr.mxu0 0.0
      %1006 = vmatpush1.msra.mxu0 0.0
      %1007 = vmatprep.subr.mxu0 0.0
      %1008 = vmatpush1.msra.mxu0 0.0
      %1009 = vmatprep.subr.mxu0 0.0
      %1010 = vmatpush1.msra.mxu0 0.0
      %1011 = vmatprep.subr.mxu0 0.0
      %1012 = vmatpush1.msra.mxu0 0.0
      %1013 = vmatprep.subr.mxu0 0.0
      %1014 = vmatpush1.msra.mxu0 0.0
      %1015 = vmatprep.subr.mxu0 0.0
      %1016 = vmatpush1.msra.mxu0 0.0
      %1017 = vmatprep.subr.mxu0 0.0
      %1018 = vmatpush1.msra.mxu0 0.0
      %1019 = vmatprep.subr.mxu0 0.0
      %1020 = vmatpush1.msra.mxu0 0.0
      %1021 = vmatprep.subr.mxu0 0.0
      %1022 = vmatpush1.msra.mxu0 0.0
      %1023 = vmatprep.subr.mxu0 0.0
      %1024 = vmatpush1.msra.mxu0 0.0
      %1025 = vmatprep.subr.mxu0 0.0
      %1026 = vmatpush1.msra.mxu0 0.0
      %1027 = vmatprep.subr.mxu0 0.0
      %1028 = vmatpush1.msra.mxu0 0.0
      %1029 = vmatprep.subr.mxu0 0.0
      %1030 = vmatpush1.msra.mxu0 0.0
      %1031 = vmatprep.subr.mxu0 0.0
      %1032 = vmatpush1.msra.mxu0 0.0
      %1033 = vmatprep.subr.mxu0 0.0
      %1034 = vmatpush1.msra.mxu0 0.0
      %1035 = vmatprep.subr.mxu0 0.0
      %1036 = vmatpush1.msra.mxu0 0.0
      %1037 = vmatprep.subr.mxu0 0.0
      %1038 = vmatpush1.msra.mxu0 0.0
      %1039 = vmatprep.subr.mxu0 0.0
      %1040 = vmatpush1.msra.mxu0 0.0
      %1041 = vmatprep.subr.mxu0 0.0
      %1042 = vmatpush1.msra.mxu0 0.0
      %1043 = vmatprep.subr.mxu0 0.0
      %1044 = vmatpush1.msra.mxu0 0.0
      %1045 = vmatprep.subr.mxu0 0.0
      %1046 = vmatpush1.msra.mxu0 0.0
      %1047 = vmatprep.subr.mxu0 0.0
      %1048 = vmatpush1.msra.mxu0 0.0
      %1049 = vmatprep.subr.mxu0 0.0
      %1050 = vmatpush1.msra.mxu0 0.0
      %1051 = vmatprep.subr.mxu0 0.0
      %1052 = vmatpush1.msra.mxu0 0.0
      %1053 = vmatprep.subr.mxu0 0.0
      %1054 = vmatpush1.msra.mxu0 0.0
      %1055 = vmatprep.subr.mxu0 0.0
      %1056 = vmatpush1.msra.mxu0 0.0
      %1057 = vmatprep.subr.mxu0 0.0
      %1058 = vmatpush1.msra.mxu0 0.0
      %1059 = vmatprep.subr.mxu0 0.0
      %1060 = vmatpush1.msra.mxu0 0.0
      %1061 = vmatprep.subr.mxu0 0.0
      %1062 = vmatpush1.msra.mxu0 0.0
      %1063 = vmatprep.subr.mxu0 0.0
      %1064 = vmatpush1.msra.mxu0 0.0
      %1065 = vmatprep.mubr.f32.mxu0 0.0
      %1066 = vmatmul.mubr.f32.gmra.mrb[0].mxu0 %v996
      %v1067 = vpop.f32.mrb[0].mxu0
      %v1068 = vadd.f32 0.0, %v1067
      %v1069 = vpop.f32.mrb[0].mxu0
      %1070 = vmatprep.mubr.f32.mxu0 0.0
      %1071 = vmatmul.mubr.f32.gmra.mrb[0].mxu0 %v999
      %v1072 = vpop.f32.mrb[0].mxu0
      %v1073 = vadd.f32 0.0, %v1072
      %v1074 = vpop.f32.mrb[0].mxu0
      %1075 = vdwg.mxu0
      %v1076 = vadd.f32 %v909, %v1068
      %v1077 = vadd.f32 %v914, %v1073
      %v1081 = vcombine.low %v591, %v592
      %v1083 = vunpack.c.l.s4 1966171168
      %v1084 = vunpack.c.0.s8 %v1083
      %v1085 = vlaneseq
      %v1086 = vshrl.u32 %v1085, 7
      %v1087 = vsub.s32 %v1084, %v1086
      %v1088 = vrot.slane %v1081, %v1087
      %v1090 = vunpack.c.l.s4 1966171168
      %v1091 = vunpack.c.0.s8 %v1090
      %v1092 = vlaneseq
      %v1093 = vshrl.u32 %v1092, 7
      %v1094 = vsub.s32 %v1091, %v1093
      %v1095 = vrot.slane %v593, %v1094
      %v1096 = vcombine.low %v1088, %v1095
      %v1098 = vunpack.c.l.s4 1966171168
      %v1099 = vunpack.c.0.s8 %v1098
      %v1100 = vlaneseq
      %v1101 = vshrl.u32 %v1100, 7
      %v1102 = vsub.s32 %v1099, %v1101
      %v1103 = vrot.slane %v1096, %v1102
      %v1105 = vlaneseq
      %vm1106 = vcmp.ge.s32.totalorder %v1105, 0
      %vm1107 = vcmp.lt.s32.totalorder %v1105, 288
      %vm1108 = vmand %vm1106, %vm1107
      %1109 = vst.msk [vmem:[%s267] sm:$0x7] %vm1108, %v1103
      %v1110 = vld [vmem:[%s267] sm:$0x1]
      %v1111 = vadd.f32 %v1110, %v1076
      %vm1112 = vcmp.lt.s32.totalorder %v1105, 18
      %vm1113 = vmand %vm1106, %vm1112
      %1114 = vst.msk [vmem:[%s267] sm:$0x1] %vm1113, %v1111
      %v1115 = vld [vmem:[%s267] sm:$0x1]
      %v1118 = vunpack.c.l.s4 1966171168
      %v1119 = vunpack.c.0.s8 %v1118
      %v1120 = vlaneseq
      %v1121 = vshrl.u32 %v1120, 7
      %v1122 = vsub.s32 %v1119, %v1121
      %v1123 = vrot.slane %v1076, %v1122
      %v1124 = vcombine.high %v1123, %v1123
      %v1126 = vunpack.c.l.s4 1966171168
      %v1127 = vunpack.c.0.s8 %v1126
      %v1128 = vlaneseq
      %v1129 = vshrl.u32 %v1128, 7
      %v1130 = vsub.s32 %v1127, %v1129
      %v1131 = vrot.slane %v1123, %v1130
      %v1133 = vunpack.c.l.s4 1966171168
      %v1134 = vunpack.c.0.s8 %v1133
      %v1135 = vlaneseq
      %v1136 = vshrl.u32 %v1135, 7
      %v1137 = vsub.s32 %v1134, %v1136
      %v1138 = vrot.slane %v1124, %v1137
      %1139 = vrot.lane.b32.xlu0 %v1138, 18
      %v1140 = vpop.permute.xlu0 %1139
      %v1142 = vadd.f32 %v1115, %v1140
      %vm1143 = vcmp.ge.s32.totalorder %v1105, 18
      %vm1144 = vcmp.lt.s32.totalorder %v1105, 36
      %vm1145 = vmand %vm1143, %vm1144
      %1146 = vst.msk [vmem:[%s267] sm:$0x1] %vm1145, %v1142
      %v1147 = vld [vmem:[%s267] sm:$0x1]
      %v1148 = vcombine.high %v1131, %v1131
      %1149 = vrot.lane.b32.xlu0 %v1148, 36
      %v1150 = vpop.permute.xlu0 %1149
      %v1152 = vadd.f32 %v1147, %v1150
      %vm1153 = vcmp.ge.s32.totalorder %v1105, 36
      %vm1154 = vcmp.lt.s32.totalorder %v1105, 54
      %vm1155 = vmand %vm1153, %vm1154
      %1156 = vst.msk [vmem:[%s267] sm:$0x1] %vm1155, %v1152
      %v1157 = vld [vmem:[%s267] sm:$0x1]
      %v1158 = vcombine.high %v1138, %v1138
      %1159 = vrot.lane.b32.xlu0 %v1158, 54
      %v1160 = vpop.permute.xlu0 %1159
      %v1162 = vadd.f32 %v1157, %v1160
      %vm1163 = vcmp.ge.s32.totalorder %v1105, 54
      %vm1164 = vcmp.lt.s32.totalorder %v1105, 72
      %vm1165 = vmand %vm1163, %vm1164
      %1166 = vst.msk [vmem:[%s267] sm:$0x1] %vm1165, %v1162
      %v1167 = vld [vmem:[%s267] sm:$0x1]
      %v1168 = vcombine.high %v1076, %v1076
      %v1170 = vunpack.c.l.s4 1966171168
      %v1171 = vunpack.c.0.s8 %v1170
      %v1172 = vlaneseq
      %v1173 = vshrl.u32 %v1172, 7
      %v1174 = vsub.s32 %v1171, %v1173
      %v1175 = vrot.slane %v1168, %v1174
      %v1177 = vunpack.c.l.s4 1966171168
      %v1178 = vunpack.c.0.s8 %v1177
      %v1179 = vlaneseq
      %v1180 = vshrl.u32 %v1179, 7
      %v1181 = vsub.s32 %v1178, %v1180
      %v1182 = vrot.slane %v1175, %v1181
      %1183 = vrot.lane.b32.xlu0 %v1182, 72
      %v1184 = vpop.permute.xlu0 %1183
      %v1186 = vadd.f32 %v1167, %v1184
      %vm1187 = vcmp.ge.s32.totalorder %v1105, 72
      %vm1188 = vcmp.lt.s32.totalorder %v1105, 90
      %vm1189 = vmand %vm1187, %vm1188
      %1190 = vst.msk [vmem:[%s267] sm:$0x1] %vm1189, %v1186
      %v1191 = vld [vmem:[%s267] sm:$0x1]
      %v1192 = vcombine.high %v1175, %v1175
      %v1194 = vunpack.c.l.s4 1966171168
      %v1195 = vunpack.c.0.s8 %v1194
      %v1196 = vlaneseq
      %v1197 = vshrl.u32 %v1196, 7
      %v1198 = vsub.s32 %v1195, %v1197
      %v1199 = vrot.slane %v1192, %v1198
      %1200 = vrot.lane.b32.xlu0 %v1199, 90
      %v1201 = vpop.permute.xlu0 %1200
      %v1203 = vadd.f32 %v1191, %v1201
      %vm1204 = vcmp.ge.s32.totalorder %v1105, 90
      %vm1205 = vcmp.lt.s32.totalorder %v1105, 108
      %vm1206 = vmand %vm1204, %vm1205
      %1207 = vst.msk [vmem:[%s267] sm:$0x1] %vm1206, %v1203
      %v1208 = vld [vmem:[%s267] sm:$0x1]
      %v1209 = vcombine.high %v1182, %v1182
      %1210 = vrot.lane.b32.xlu0 %v1209, 108
      %v1211 = vpop.permute.xlu0 %1210
      %v1213 = vadd.f32 %v1208, %v1211
      %vm1214 = vcmp.ge.s32.totalorder %v1105, 108
      %vm1215 = vcmp.lt.s32.totalorder %v1105, 126
      %vm1216 = vmand %vm1214, %vm1215
      %1217 = vst.msk [vmem:[%s267] sm:$0x1] %vm1216, %v1213
      %v1218 = vld [vmem:[%s267] sm:$0x3]
      %v1219 = vcombine.high %v1199, %v1199
      %1220 = vrot.lane.b32.xlu0 %v1219, 126
      %v1221 = vpop.permute.xlu0 %1220
      %v1222 = vrot.slane %v1221, 7
      %v1223 = vsel %vm473, %v1222, %v1221
      %v1225 = vadd.f32 %v1218, %v1223
      %vm1226 = vcmp.ge.s32.totalorder %v1105, 126
      %vm1227 = vcmp.lt.s32.totalorder %v1105, 144
      %vm1228 = vmand %vm1226, %vm1227
      %1229 = vst.msk [vmem:[%s267] sm:$0x3] %vm1228, %v1225
      %v1230 = vld [vmem:[%s267 + $0x1] sm:$0x1]
      %v1233 = vunpack.c.l.s4 1966171168
      %v1234 = vunpack.c.0.s8 %v1233
      %v1235 = vlaneseq
      %v1236 = vshrl.u32 %v1235, 7
      %v1237 = vsub.s32 %v1234, %v1236
      %v1238 = vrot.slane %v1077, %v1237
      %v1240 = vunpack.c.l.s4 1966171168
      %v1241 = vunpack.c.0.s8 %v1240
      %v1242 = vlaneseq
      %v1243 = vshrl.u32 %v1242, 7
      %v1244 = vsub.s32 %v1241, %v1243
      %v1245 = vrot.slane %v1238, %v1244
      %1246 = vrot.lane.b32.xlu0 %v1245, 16
      %v1247 = vpop.permute.xlu0 %1246
      %v1249 = vadd.f32 %v1230, %v1247
      %vm1250 = vcmp.ge.s32.totalorder %v1105, 16
      %vm1251 = vcmp.lt.s32.totalorder %v1105, 34
      %vm1252 = vmand %vm1250, %vm1251
      %1253 = vst.msk [vmem:[%s267 + $0x1] sm:$0x1] %vm1252, %v1249
      %v1254 = vld [vmem:[%s267 + $0x1] sm:$0x1]
      %v1255 = vcombine.high %v1238, %v1238
      %v1257 = vunpack.c.l.s4 1966171168
      %v1258 = vunpack.c.0.s8 %v1257
      %v1259 = vlaneseq
      %v1260 = vshrl.u32 %v1259, 7
      %v1261 = vsub.s32 %v1258, %v1260
      %v1262 = vrot.slane %v1255, %v1261
      %1263 = vrot.lane.b32.xlu0 %v1262, 34
      %v1264 = vpop.permute.xlu0 %1263
      %v1266 = vadd.f32 %v1254, %v1264
      %vm1267 = vcmp.ge.s32.totalorder %v1105, 34
      %vm1268 = vcmp.lt.s32.totalorder %v1105, 52
      %vm1269 = vmand %vm1267, %vm1268
      %1270 = vst.msk [vmem:[%s267 + $0x1] sm:$0x1] %vm1269, %v1266
      %v1271 = vld [vmem:[%s267 + $0x1] sm:$0x1]
      %v1272 = vcombine.high %v1245, %v1245
      %1273 = vrot.lane.b32.xlu0 %v1272, 52
      %v1274 = vpop.permute.xlu0 %1273
      %v1276 = vadd.f32 %v1271, %v1274
      %vm1277 = vcmp.ge.s32.totalorder %v1105, 52
      %vm1278 = vcmp.lt.s32.totalorder %v1105, 70
      %vm1279 = vmand %vm1277, %vm1278
      %1280 = vst.msk [vmem:[%s267 + $0x1] sm:$0x1] %vm1279, %v1276
      %v1281 = vld [vmem:[%s267 + $0x1] sm:$0x1]
      %v1282 = vcombine.high %v1262, %v1262
      %1283 = vrot.lane.b32.xlu0 %v1282, 70
      %v1284 = vpop.permute.xlu0 %1283
      %v1286 = vadd.f32 %v1281, %v1284
      %vm1287 = vcmp.ge.s32.totalorder %v1105, 70
      %vm1288 = vcmp.lt.s32.totalorder %v1105, 88
      %vm1289 = vmand %vm1287, %vm1288
      %1290 = vst.msk [vmem:[%s267 + $0x1] sm:$0x1] %vm1289, %v1286
      %v1291 = vld [vmem:[%s267 + $0x1] sm:$0x1]
      %v1292 = vcombine.high %v1077, %v1077
      %v1294 = vunpack.c.l.s4 1966171168
      %v1295 = vunpack.c.0.s8 %v1294
      %v1296 = vlaneseq
      %v1297 = vshrl.u32 %v1296, 7
      %v1298 = vsub.s32 %v1295, %v1297
      %v1299 = vrot.slane %v1292, %v1298
      %v1301 = vunpack.c.l.s4 1966171168
      %v1302 = vunpack.c.0.s8 %v1301
      %v1303 = vlaneseq
      %v1304 = vshrl.u32 %v1303, 7
      %v1305 = vsub.s32 %v1302, %v1304
      %v1306 = vrot.slane %v1299, %v1305
      %1307 = vrot.lane.b32.xlu0 %v1306, 88
      %v1308 = vpop.permute.xlu0 %1307
      %v1310 = vadd.f32 %v1291, %v1308
      %vm1311 = vcmp.ge.s32.totalorder %v1105, 88
      %vm1312 = vcmp.lt.s32.totalorder %v1105, 106
      %vm1313 = vmand %vm1311, %vm1312
      %1314 = vst.msk [vmem:[%s267 + $0x1] sm:$0x1] %vm1313, %v1310
      %v1315 = vld [vmem:[%s267 + $0x1] sm:$0x1]
      %v1316 = vcombine.high %v1299, %v1299
      %v1318 = vunpack.c.l.s4 1966171168
      %v1319 = vunpack.c.0.s8 %v1318
      %v1320 = vlaneseq
      %v1321 = vshrl.u32 %v1320, 7
      %v1322 = vsub.s32 %v1319, %v1321
      %v1323 = vrot.slane %v1316, %v1322
      %1324 = vrot.lane.b32.xlu0 %v1323, 106
      %v1325 = vpop.permute.xlu0 %1324
      %v1327 = vadd.f32 %v1315, %v1325
      %vm1328 = vcmp.ge.s32.totalorder %v1105, 106
      %vm1329 = vcmp.lt.s32.totalorder %v1105, 124
      %vm1330 = vmand %vm1328, %vm1329
      %1331 = vst.msk [vmem:[%s267 + $0x1] sm:$0x1] %vm1330, %v1327
      %v1332 = vld [vmem:[%s267 + $0x1] sm:$0x3]
      %v1333 = vcombine.high %v1306, %v1306
      %1334 = vrot.lane.b32.xlu0 %v1333, 124
      %v1335 = vpop.permute.xlu0 %1334
      %v1336 = vrot.slane %v1335, 7
      %vm1337 = vcmask 1014784
      %v1338 = vsel %vm1337, %v1336, %v1335
      %v1340 = vadd.f32 %v1332, %v1338
      %vm1341 = vcmp.ge.s32.totalorder %v1105, 124
      %vm1342 = vcmp.lt.s32.totalorder %v1105, 142
      %vm1343 = vmand %vm1341, %vm1342
      %1344 = vst.msk [vmem:[%s267 + $0x1] sm:$0x3] %vm1343, %v1340
      %v1345 = vld [vmem:[%s267 + $0x2] sm:$0x1]
      %v1346 = vcombine.high %v1323, %v1323
      %1347 = vrot.lane.b32.xlu0 %v1346, 14
      %v1348 = vpop.permute.xlu0 %1347
      %v1350 = vadd.f32 %v1345, %v1348
      %vm1351 = vcmp.ge.s32.totalorder %v1105, 14
      %vm1352 = vcmp.lt.s32.totalorder %v1105, 32
      %vm1353 = vmand %vm1351, %vm1352
      %1354 = vst.msk [vmem:[%s267 + $0x2] sm:$0x1] %vm1353, %v1350
      %v1355 = vld [vmem:[%s267] sm:$0x7]
      %v1356 = vsub.f32 0.0, %v1355
      %v1357 = vmul.f32 %v1356, 1.442695
      %v1358 = vpow.pop %v1357
      %v1359 = vadd.f32 %v1358, 1.0
      %v1360 = vrcp.pop %v1359
      %1361 = vst.msk [vmem:[%s267] sm:$0x7] %vm1108, %v1360
      %p1362 = scmp.lt.s32.totalorder %s18, 1
      %s1363 = scalar_select %p1362, %s18, 1
      %s1364 = smul.addr %s1363, 3
      %s1365 = scalar_lea.vmem %s6, %s1364
      // Predicated region
      $region45: #{forward.1} parent=43 // pred_check
        %p1366 = pneg %p172
      $region46: #{forward.1} parent=43 // pred_check_branch
        %1368 = sbr.rel (%p1366) target = $region48
      $region47: #{forward.1} parent=43 // pred_region
        _
      $region48: #{forward.1} parent=43 // pred_fallthru
        _
    $region44: #{forward.1} parent=5 // pred_fallthru
      _
    %p1369 = scmp.le.s32.totalorder 2, %s13
    // Predicated region
    $region49: #{forward.1} parent=5 // pred_check
      %p1370 = pneg %p1369
    $region50: #{forward.1} parent=5 // pred_check_branch
      %1372 = sbr.rel (%p1370) target = $region52
    $region51: #{forward.1} parent=5 // pred_region
      %s1373 = ssub.s32 %s13, 2
      // Predicated region
      $region53: #{forward.1} parent=51 // pred_check
        %p1374 = pneg %p178
      $region54: #{forward.1} parent=51 // pred_check_branch
        %1376 = sbr.rel (%p1374) target = $region56
      $region55: #{forward.1} parent=51 // pred_region
        %p1377 = scmp.lt.s32.totalorder %s19, 1
        %s1378 = scalar_select %p1377, %s19, 1
        %s1379 = smul.addr %s1378, 3
        %s1380 = scalar_lea.vmem %s6, %s1379
      $region56: #{forward.1} parent=51 // pred_fallthru
        _
    $region52: #{forward.1} parent=5 // pred_fallthru
      _
  $region6: #{forward.1} parent=0 // loop_footer
    %s17 = sadd.s32 1, %s13
  $region7: #{forward.1} parent=0 // loop_footer_branch
    %12 = sbr.rel target = $region3
  $region8: #{forward.1} parent=0 // loop_exit
    _

</llo_original>
